<compile_context>
chip_gen: v7x
topology: tpu7x:2x2x1
jax: 0.10.0
libtpu: 0.0.40
codegen_flags: <defaults>
</compile_context>

<pallas_src>
import jax
import jax.numpy as jnp
from jax.experimental import pallas as pl
from jax.experimental.pallas import tpu as pltpu

# ---- model geometry (fixed by the torch module: classifier sized from a 10x10 dummy) ----
H_IN = W_IN = 10        # input spatial size
KSIZE = 5               # conv kernel size
PAD = 2                 # conv padding
HID = 32                # hidden_dim (conv channels)
NUM_CLASSES = 6
CLS_PAD = 128           # classes zero-padded to a full lane width
FC_IN = HID * 4         # 128 classifier inputs (32 ch * 2 * 2)

B_TILE = 8              # images per grid step
ROWS_PER_IMG = 16       # conv1 output rows per image (10 real + 6 zero pad rows)
K1 = 128                # conv1 im2col width (70 taps + bias column, zero-padded)
N1 = 2 * HID * 8        # 512 conv1 output lanes, ordered (x-parity q, co, padded col X')
N1H = N1 // 2           # 256
R1 = B_TILE * ROWS_PER_IMG   # 128 conv1 rows per block, ordered (y-parity p, Y', image)
R1H = R1 // 2           # 64
R2 = 4 * B_TILE         # 32 conv2 output rows kept (Yo in 0..3), ordered (Yo, image)
N2 = 4 * HID            # 128 conv2 output lanes, ordered (x-parity q2, co, j)
N2H = N2 // 2           # 64

BATCH = 16
BN_EPS = 1e-5


# ----------------------------------------------------------------------------- kernel
def _cnn_kernel(x_ref, w1_ref, w2_ref, b2_ref, wfc_ref, bfc_ref, out_ref, p_ref):
    """One tile of B_TILE images per grid step.

    x_ref  : (128, 128)    conv1 im2col rows, row order (p, Y', image); col 70 carries the bias
    w1_ref : (128, 512)    conv1 weight (BN folded, Toeplitz over dx), lanes (q, co, X')
    w2_ref : (5, 256, 128) conv2 weight per kernel row dy, lanes (q2, co, j)
    b2_ref : (1, 128)      conv2 folded bias (replicated over X)
    wfc_ref: (128, 128)    classifier weight in fc-input order (i, co, j), classes padded
    bfc_ref: (1, 128)      classifier bias (padded)
    out_ref: (8, 128)      padded logits, one row per image (lane-dense unmasked store)
    p_ref  : (64, 256)     scratch: zero-padded pool1 map, rows Y'*8+img, lanes co*8+X'
    """
    xb = x_ref[...]
    # conv1 (+ folded BN, bias via the ones-column) + ReLU + maxpool1.
    # Rows are ordered p*64 + Y'*8 + img, so pool1's y-pairs are the two row halves;
    # output lanes are ordered q*256 + co*8 + X', so pool1's x-pairs are the lane halves.
    # The two lane halves are computed as two dots to bound register liveness.
    acc = jnp.dot(xb, w1_ref[:, 0:N1H], preferred_element_type=jnp.float32)     # (128, 256)
    ph = jnp.maximum(jnp.maximum(acc[0:R1H, :], acc[R1H:R1, :]), 0.0)
    acc = jnp.dot(xb, w1_ref[:, N1H:N1], preferred_element_type=jnp.float32)
    p_ref[...] = jnp.maximum(
        ph, jnp.maximum(jnp.maximum(acc[0:R1H, :], acc[R1H:R1, :]), 0.0))        # (64, 256)

    # conv2 (+ folded BN) accumulated over the 5 kernel rows; each LHS is a contiguous,
    # sublane-aligned 32-row window of the padded pool1 map (only the 16 output pixels
    # per image that survive maxpool2 are computed).
    acc2 = jnp.zeros((R2, N2), jnp.float32)
    for dy in range(KSIZE):
        acc2 = acc2 + jnp.dot(p_ref[dy * B_TILE:dy * B_TILE + R2, :], w2_ref[dy],
                              preferred_element_type=jnp.float32)
    act2 = jnp.maximum(acc2 + b2_ref[...], 0.0)                                  # (32, 128)

    # maxpool2 + flatten: x-pairs are the lane halves (q2), y-pairs are 8-row blocks.
    xm = jnp.maximum(act2[:, 0:N2H], act2[:, N2H:N2])                            # (32, 64)
    h = jnp.concatenate(
        [jnp.maximum(xm[0:B_TILE, :], xm[B_TILE:2 * B_TILE, :]),
         jnp.maximum(xm[2 * B_TILE:3 * B_TILE, :], xm[3 * B_TILE:4 * B_TILE, :])],
        axis=-1)                                                                 # (8, 128)

    # classifier (classes padded to 128 -> unmasked lane-dense store).
    out_ref[...] = (jnp.dot(h, wfc_ref[...], preferred_element_type=jnp.float32)
                    + bfc_ref[...])


# ----------------------------------------------------------------------------- params
def init_params(key, hidden_dim=HID, num_classes=NUM_CLASSES):
    """Deterministic torch-like init (uniform +-1/sqrt(fan_in)); BN stats randomized so
    the eval-mode BN folding is actually exercised."""
    ks = jax.random.split(key, 14)

    def u(k, shape, bound):
        return jax.random.uniform(k, shape, jnp.float32, -bound, bound)

    b1c = 1.0 / (1 * KSIZE * KSIZE) ** 0.5
    b2c = 1.0 / (hidden_dim * KSIZE * KSIZE) ** 0.5
    bfcc = 1.0 / FC_IN ** 0.5
    return dict(
        w1=u(ks[0], (hidden_dim, 1, KSIZE, KSIZE), b1c),
        b1=u(ks[1], (hidden_dim,), b1c),
        g1=jax.random.uniform(ks[2], (hidden_dim,), jnp.float32, 0.5, 1.5),
        be1=u(ks[3], (hidden_dim,), 0.5),
        m1=u(ks[4], (hidden_dim,), 0.5),
        v1=jax.random.uniform(ks[5], (hidden_dim,), jnp.float32, 0.5, 1.5),
        w2=u(ks[6], (hidden_dim, hidden_dim, KSIZE, KSIZE), b2c),
        b2=u(ks[7], (hidden_dim,), b2c),
        g2=jax.random.uniform(ks[8], (hidden_dim,), jnp.float32, 0.5, 1.5),
        be2=u(ks[9], (hidden_dim,), 0.5),
        m2=u(ks[10], (hidden_dim,), 0.5),
        v2=jax.random.uniform(ks[11], (hidden_dim,), jnp.float32, 0.5, 1.5),
        wfc=u(ks[12], (num_classes, FC_IN), bfcc),
        bfc=u(ks[13], (num_classes,), bfcc),
    )


def pack_params(p, eps=BN_EPS):
    """One-time weight packing: fold eval-mode BN, Toeplitz-expand the convs over dx,
    reorder rows/lanes to the kernel's pooling-friendly layouts, pad the classifier."""
    # TODO(synk): training-mode BatchNorm (batch statistics) is not implemented; eval-mode
    # running stats are folded into the conv weights/biases here.
    f32 = jnp.float32
    hi = jax.lax.Precision.HIGHEST
    hid = HID

    s1 = p["g1"] / jnp.sqrt(p["v1"] + eps)
    t1 = p["be1"] - p["m1"] * s1
    s2 = p["g2"] / jnp.sqrt(p["v2"] + eps)
    t2 = p["be2"] - p["m2"] * s2

    w1f = jnp.transpose(p["w1"], (2, 3, 1, 0)).reshape(KSIZE, KSIZE, hid) * s1  # [dy, dx, co]
    b1f = p["b1"] * s1 + t1
    w2f = jnp.transpose(p["w2"], (2, 3, 1, 0)) * s2                             # [dy, dx, ci, co]
    b2f = p["b2"] * s2 + t2

    # ---- conv1 weight: rows (dy, xp) + bias row, cols (q, co, X') with x' = 2*X' + q ----
    dxs = jnp.arange(KSIZE)
    xps = jnp.arange(W_IN + 2 * PAD)                 # padded input column 0..13
    qs = jnp.arange(2)
    Xs = jnp.arange(8)                               # padded pooled column X' 0..7
    x_real = 2 * Xs[None, :] + qs[:, None] - 2 * PAD  # (q, X') -> conv1 output column x
    valid = (x_real >= 0) & (x_real <= W_IN - 1)
    # S1[xp, dx, q, X'] = 1 iff xp == x + dx and x is a real output column
    S1 = ((xps[:, None, None, None] ==
           x_real[None, None, :, :] + dxs[None, :, None, None]) &
          valid[None, None, :, :]).astype(f32)
    core1 = jnp.einsum("adqx,edc->eaqcx", S1, w1f, precision=hi)      # (dy, xp, q, co, X')
    w1rows = core1.reshape(KSIZE * (W_IN + 2 * PAD), N1)              # (70, 512)
    brow = (b1f[None, :, None] * valid.astype(f32)[:, None, :]).reshape(1, N1)
    w1big = jnp.concatenate(
        [w1rows, brow, jnp.zeros((K1 - w1rows.shape[0] - 1, N1), f32)], axis=0)  # (128, 512)

    # ---- conv2 weight: per dy, rows (ci, X'src), cols (q2, co, j) with X = 2*j + q2 ----
    ss = jnp.arange(8)
    js = jnp.arange(2)
    S2 = (ss[:, None, None, None] ==
          2 * js[None, None, None, :] + qs[None, None, :, None] +
          dxs[None, :, None, None]).astype(f32)                        # (X'src, dx, q2, j)
    core2 = jnp.einsum("sdqj,edic->eisqcj", S2, w2f, precision=hi)     # (dy, ci, X', q2, co, j)
    w2big = core2.reshape(KSIZE, hid * 8, N2)                          # (5, 256, 128)
    b2big = jnp.broadcast_to(b2f[None, :, None], (2, hid, 2)).reshape(1, N2)

    # ---- classifier: torch flatten order (co, i, j) -> kernel fc-input order (i, co, j) ----
    nc = p["wfc"].shape[0]
    wfc = p["wfc"].reshape(nc, hid, 2, 2)                              # [cls, co, i, j]
    wfc = jnp.transpose(wfc, (2, 1, 3, 0)).reshape(FC_IN, nc)          # [(i, co, j), cls]
    wfcp = jnp.pad(wfc, ((0, 0), (0, CLS_PAD - nc)))                   # (128, 128)
    bfcp = jnp.pad(p["bfc"], (0, CLS_PAD - nc)).reshape(1, CLS_PAD)
    return w1big, w2big, b2big, wfcp, bfcp


# ----------------------------------------------------------------------------- wrapper
def _conv1_im2col(x):
    """(B, 1, 10, 10) NCHW -> (B*16, 128) conv1 im2col rows in the kernel's row order."""
    B = x.shape[0]
    xf = x.astype(jnp.float32).reshape(B, H_IN, W_IN)
    xpad = jnp.pad(xf, ((0, 0), (PAD, PAD), (PAD, PAD)))               # (B, 14, 14)
    taps = jnp.stack([xpad[:, dy:dy + H_IN, :] for dy in range(KSIZE)], axis=2)
    taps = taps.reshape(B, H_IN, KSIZE * (W_IN + 2 * PAD))             # (B, 10, 70)
    rows = jnp.zeros((B, ROWS_PER_IMG, K1), jnp.float32)
    rows = rows.at[:, 2 * PAD:2 * PAD + H_IN, :taps.shape[-1]].set(taps)   # real rows y' = y+4
    rows = rows.at[:, 2 * PAD:2 * PAD + H_IN, taps.shape[-1]].set(1.0)     # ones / bias column
    g = B // B_TILE
    rows = rows.reshape(g, B_TILE, 8, 2, K1)          # [g, img, Y', p, k]   (y' = 2*Y' + p)
    rows = jnp.transpose(rows, (0, 3, 2, 1, 4))        # [g, p, Y', img, k]
    return rows.reshape(g * R1, K1)


@jax.jit
def cnn_classifier_forward(x, packed):
    """x: (B, 1, 10, 10) NCHW float32 -> logits (B, NUM_CLASSES)."""
    w1big, w2big, b2big, wfcp, bfcp = packed
    B = x.shape[0]
    bp = -(-B // B_TILE) * B_TILE
    if bp != B:                                        # pad the batch to a tile multiple
        x = jnp.pad(x, ((0, bp - B), (0, 0), (0, 0), (0, 0)))
    lhs = _conv1_im2col(x)                             # (bp*16, 128), lane-dense per-tile DMA
    grid = bp // B_TILE

    out = pl.pallas_call(
        _cnn_kernel,
        grid=(grid,),
        in_specs=[
            pl.BlockSpec((R1, K1), lambda g: (g, 0)),
            pl.BlockSpec(w1big.shape, lambda g: (0, 0)),      # weights stay resident in VMEM
            pl.BlockSpec(w2big.shape, lambda g: (0, 0, 0)),
            pl.BlockSpec(b2big.shape, lambda g: (0, 0)),
            pl.BlockSpec(wfcp.shape, lambda g: (0, 0)),
            pl.BlockSpec(bfcp.shape, lambda g: (0, 0)),
        ],
        out_specs=pl.BlockSpec((B_TILE, CLS_PAD), lambda g: (g, 0)),
        out_shape=jax.ShapeDtypeStruct((bp, CLS_PAD), jnp.float32),
        scratch_shapes=[pltpu.VMEM((8 * B_TILE, HID * 8), jnp.float32)],
        compiler_params=pltpu.CompilerParams(dimension_semantics=("parallel",)),
    )(lhs, w1big, w2big, b2big, wfcp, bfcp)
    return out[:B, :NUM_CLASSES]


# ----------------------------------------------------------------------------- reference
def reference_forward(x, p, eps=BN_EPS):
    """Pure-JAX replica of the torch forward (eval-mode BN)."""
    prec = jax.lax.Precision.HIGHEST

    def block(h, w, b, g, be, m, v):
        h = jax.lax.conv_general_dilated(
            h, w, (1, 1), ((PAD, PAD), (PAD, PAD)),
            dimension_numbers=("NCHW", "OIHW", "NCHW"), precision=prec)
        h = h + b[None, :, None, None]
        h = (h - m[None, :, None, None]) * (g / jnp.sqrt(v + eps))[None, :, None, None] \
            + be[None, :, None, None]
        h = jnp.maximum(h, 0.0)
        return jax.lax.reduce_window(h, -jnp.inf, jax.lax.max,
                                     (1, 1, 2, 2), (1, 1, 2, 2), "VALID")

    h = block(x.astype(jnp.float32), p["w1"], p["b1"], p["g1"], p["be1"], p["m1"], p["v1"])
    h = block(h, p["w2"], p["b2"], p["g2"], p["be2"], p["m2"], p["v2"])
    h = h.reshape(h.shape[0], -1)
    return jnp.dot(h, p["wfc"].T, precision=prec) + p["bfc"]


if __name__ == "__main__":
    key = jax.random.PRNGKey(0)
    kp, kx = jax.random.split(key)

    params = init_params(kp)
    packed = pack_params(params)                  # one-time weight packing / BN folding
    x = jax.random.normal(kx, (BATCH, 1, H_IN, W_IN), jnp.float32)

    out = jax.block_until_ready(cnn_classifier_forward(x, packed))
    ref = jax.block_until_ready(reference_forward(x, params))

    assert out.shape == (BATCH, NUM_CLASSES)
    err = jnp.max(jnp.abs(out - ref))
    if not jnp.allclose(out, ref, atol=2e-2, rtol=2e-2):
        raise AssertionError(f"mismatch vs reference, max abs err = {err}")
    print("KERNEL_OK")
</pallas_src>

<mosaic_0001>
module attributes {stable_mosaic.version = 11 : i64} {
  func.func @_cnn_kernel(%arg0: i32, %arg1: memref<128x128xf32, #tpu.memory_space<vmem>>, %arg2: memref<128x512xf32, #tpu.memory_space<vmem>>, %arg3: memref<5x256x128xf32, #tpu.memory_space<vmem>>, %arg4: memref<1x128xf32, #tpu.memory_space<vmem>>, %arg5: memref<128x128xf32, #tpu.memory_space<vmem>>, %arg6: memref<1x128xf32, #tpu.memory_space<vmem>>, %arg7: memref<8x128xf32, #tpu.memory_space<vmem>>, %arg8: memref<64x256xf32, #tpu.memory_space<vmem>>) attributes {dimension_semantics = [#tpu.dimension_semantics<parallel>], iteration_bounds = array<i64: 2>, scalar_prefetch = 0 : i64, scratch_operands = 1 : i64, tpu.core_type = #tpu.core_type<tc>, window_params = [{transform_indices = @transform_0, window_bounds = array<i64: 128, 128>}, {pipeline_mode = #tpu.pipeline_mode<synchronous>, transform_indices = @transform_1, window_bounds = array<i64: 128, 512>}, {pipeline_mode = #tpu.pipeline_mode<synchronous>, transform_indices = @transform_2, window_bounds = array<i64: 5, 256, 128>}, {pipeline_mode = #tpu.pipeline_mode<synchronous>, transform_indices = @transform_3, window_bounds = array<i64: 1, 128>}, {pipeline_mode = #tpu.pipeline_mode<synchronous>, transform_indices = @transform_4, window_bounds = array<i64: 128, 128>}, {pipeline_mode = #tpu.pipeline_mode<synchronous>, transform_indices = @transform_5, window_bounds = array<i64: 1, 128>}, {transform_indices = @transform_6, window_bounds = array<i64: 8, 128>}]} {
    %c0 = arith.constant 0 : index
    %c0_0 = arith.constant 0 : index
    %0 = vector.load %arg1[%c0, %c0_0] : memref<128x128xf32, #tpu.memory_space<vmem>>, vector<128x128xf32>
    %c0_1 = arith.constant 0 : index
    %c0_2 = arith.constant 0 : index
    %1 = vector.load %arg2[%c0_1, %c0_2] : memref<128x512xf32, #tpu.memory_space<vmem>>, vector<128x256xf32>
    %cst = arith.constant dense<0.000000e+00> : vector<128x256xf32>
    %2 = tpu.matmul %0, %1, %cst {dimension_numbers = #tpu.dot_dimension_numbers<[1], [0], [0], [1], [0, 0, 1, 1], [], []>} : vector<128x128xf32>, vector<128x256xf32>, vector<128x256xf32> -> vector<128x256xf32>
    %3 = vector.extract_strided_slice %2 {offsets = [0, 0], sizes = [64, 256], strides = [1, 1]} : vector<128x256xf32> to vector<64x256xf32>
    %4 = vector.extract_strided_slice %2 {offsets = [64, 0], sizes = [64, 256], strides = [1, 1]} : vector<128x256xf32> to vector<64x256xf32>
    %5 = arith.maximumf %3, %4 : vector<64x256xf32>
    %cst_3 = arith.constant 0.000000e+00 : f32
    %6 = vector.broadcast %cst_3 : f32 to vector<64x256xf32>
    %7 = arith.maximumf %5, %6 : vector<64x256xf32>
    %c0_4 = arith.constant 0 : index
    %c256 = arith.constant 256 : index
    %8 = vector.load %arg2[%c0_4, %c256] : memref<128x512xf32, #tpu.memory_space<vmem>>, vector<128x256xf32>
    %cst_5 = arith.constant dense<0.000000e+00> : vector<128x256xf32>
    %9 = tpu.matmul %0, %8, %cst_5 {dimension_numbers = #tpu.dot_dimension_numbers<[1], [0], [0], [1], [0, 0, 1, 1], [], []>} : vector<128x128xf32>, vector<128x256xf32>, vector<128x256xf32> -> vector<128x256xf32>
    %10 = vector.extract_strided_slice %9 {offsets = [0, 0], sizes = [64, 256], strides = [1, 1]} : vector<128x256xf32> to vector<64x256xf32>
    %11 = vector.extract_strided_slice %9 {offsets = [64, 0], sizes = [64, 256], strides = [1, 1]} : vector<128x256xf32> to vector<64x256xf32>
    %12 = arith.maximumf %10, %11 : vector<64x256xf32>
    %cst_6 = arith.constant 0.000000e+00 : f32
    %13 = vector.broadcast %cst_6 : f32 to vector<64x256xf32>
    %14 = arith.maximumf %12, %13 : vector<64x256xf32>
    %15 = arith.maximumf %7, %14 : vector<64x256xf32>
    %c0_7 = arith.constant 0 : index
    %c0_8 = arith.constant 0 : index
    %16 = vector.load %arg8[%c0_7, %c0_8] : memref<64x256xf32, #tpu.memory_space<vmem>>, vector<64x256xf32>
    tpu.vector_store %arg8[%c0_7, %c0_8], %15 {strides = array<i32>} : memref<64x256xf32, #tpu.memory_space<vmem>>, vector<64x256xf32>,
    %cst_9 = arith.constant 0.000000e+00 : f32
    %17 = vector.broadcast %cst_9 : f32 to vector<32x128xf32>
    %c0_10 = arith.constant 0 : index
    %c0_11 = arith.constant 0 : index
    %18 = vector.load %arg8[%c0_10, %c0_11] : memref<64x256xf32, #tpu.memory_space<vmem>>, vector<32x256xf32>
    %c0_12 = arith.constant 0 : index
    %c0_13 = arith.constant 0 : index
    %c0_14 = arith.constant 0 : index
    %19 = vector.load %arg3[%c0_12, %c0_13, %c0_14] : memref<5x256x128xf32, #tpu.memory_space<vmem>>, vector<1x256x128xf32>
    %20 = vector.shape_cast %19 : vector<1x256x128xf32> to vector<256x128xf32>
    %cst_15 = arith.constant dense<0.000000e+00> : vector<32x128xf32>
    %21 = tpu.matmul %18, %20, %cst_15 {dimension_numbers = #tpu.dot_dimension_numbers<[1], [0], [0], [1], [0, 0, 1, 1], [], []>} : vector<32x256xf32>, vector<256x128xf32>, vector<32x128xf32> -> vector<32x128xf32>
    %22 = arith.addf %17, %21 : vector<32x128xf32>
    %c8 = arith.constant 8 : index
    %c0_16 = arith.constant 0 : index
    %23 = vector.load %arg8[%c8, %c0_16] : memref<64x256xf32, #tpu.memory_space<vmem>>, vector<32x256xf32>
    %c1 = arith.constant 1 : index
    %c0_17 = arith.constant 0 : index
    %c0_18 = arith.constant 0 : index
    %24 = vector.load %arg3[%c1, %c0_17, %c0_18] : memref<5x256x128xf32, #tpu.memory_space<vmem>>, vector<1x256x128xf32>
    %25 = vector.shape_cast %24 : vector<1x256x128xf32> to vector<256x128xf32>
    %cst_19 = arith.constant dense<0.000000e+00> : vector<32x128xf32>
    %26 = tpu.matmul %23, %25, %cst_19 {dimension_numbers = #tpu.dot_dimension_numbers<[1], [0], [0], [1], [0, 0, 1, 1], [], []>} : vector<32x256xf32>, vector<256x128xf32>, vector<32x128xf32> -> vector<32x128xf32>
    %27 = arith.addf %22, %26 : vector<32x128xf32>
    %c16 = arith.constant 16 : index
    %c0_20 = arith.constant 0 : index
    %28 = vector.load %arg8[%c16, %c0_20] : memref<64x256xf32, #tpu.memory_space<vmem>>, vector<32x256xf32>
    %c2 = arith.constant 2 : index
    %c0_21 = arith.constant 0 : index
    %c0_22 = arith.constant 0 : index
    %29 = vector.load %arg3[%c2, %c0_21, %c0_22] : memref<5x256x128xf32, #tpu.memory_space<vmem>>, vector<1x256x128xf32>
    %30 = vector.shape_cast %29 : vector<1x256x128xf32> to vector<256x128xf32>
    %cst_23 = arith.constant dense<0.000000e+00> : vector<32x128xf32>
    %31 = tpu.matmul %28, %30, %cst_23 {dimension_numbers = #tpu.dot_dimension_numbers<[1], [0], [0], [1], [0, 0, 1, 1], [], []>} : vector<32x256xf32>, vector<256x128xf32>, vector<32x128xf32> -> vector<32x128xf32>
    %32 = arith.addf %27, %31 : vector<32x128xf32>
    %c24 = arith.constant 24 : index
    %c0_24 = arith.constant 0 : index
    %33 = vector.load %arg8[%c24, %c0_24] : memref<64x256xf32, #tpu.memory_space<vmem>>, vector<32x256xf32>
    %c3 = arith.constant 3 : index
    %c0_25 = arith.constant 0 : index
    %c0_26 = arith.constant 0 : index
    %34 = vector.load %arg3[%c3, %c0_25, %c0_26] : memref<5x256x128xf32, #tpu.memory_space<vmem>>, vector<1x256x128xf32>
    %35 = vector.shape_cast %34 : vector<1x256x128xf32> to vector<256x128xf32>
    %cst_27 = arith.constant dense<0.000000e+00> : vector<32x128xf32>
    %36 = tpu.matmul %33, %35, %cst_27 {dimension_numbers = #tpu.dot_dimension_numbers<[1], [0], [0], [1], [0, 0, 1, 1], [], []>} : vector<32x256xf32>, vector<256x128xf32>, vector<32x128xf32> -> vector<32x128xf32>
    %37 = arith.addf %32, %36 : vector<32x128xf32>
    %c32 = arith.constant 32 : index
    %c0_28 = arith.constant 0 : index
    %38 = vector.load %arg8[%c32, %c0_28] : memref<64x256xf32, #tpu.memory_space<vmem>>, vector<32x256xf32>
    %c4 = arith.constant 4 : index
    %c0_29 = arith.constant 0 : index
    %c0_30 = arith.constant 0 : index
    %39 = vector.load %arg3[%c4, %c0_29, %c0_30] : memref<5x256x128xf32, #tpu.memory_space<vmem>>, vector<1x256x128xf32>
    %40 = vector.shape_cast %39 : vector<1x256x128xf32> to vector<256x128xf32>
    %cst_31 = arith.constant dense<0.000000e+00> : vector<32x128xf32>
    %41 = tpu.matmul %38, %40, %cst_31 {dimension_numbers = #tpu.dot_dimension_numbers<[1], [0], [0], [1], [0, 0, 1, 1], [], []>} : vector<32x256xf32>, vector<256x128xf32>, vector<32x128xf32> -> vector<32x128xf32>
    %42 = arith.addf %37, %41 : vector<32x128xf32>
    %c0_32 = arith.constant 0 : index
    %c0_33 = arith.constant 0 : index
    %43 = vector.load %arg4[%c0_32, %c0_33] : memref<1x128xf32, #tpu.memory_space<vmem>>, vector<1x128xf32>
    %44 = vector.broadcast %43 : vector<1x128xf32> to vector<32x128xf32>
    %45 = arith.addf %42, %44 : vector<32x128xf32>
    %cst_34 = arith.constant 0.000000e+00 : f32
    %46 = vector.broadcast %cst_34 : f32 to vector<32x128xf32>
    %47 = arith.maximumf %45, %46 : vector<32x128xf32>
    %48 = vector.extract_strided_slice %47 {offsets = [0, 0], sizes = [32, 64], strides = [1, 1]} : vector<32x128xf32> to vector<32x64xf32>
    %49 = vector.extract_strided_slice %47 {offsets = [0, 64], sizes = [32, 64], strides = [1, 1]} : vector<32x128xf32> to vector<32x64xf32>
    %50 = arith.maximumf %48, %49 : vector<32x64xf32>
    %51 = vector.extract_strided_slice %50 {offsets = [0, 0], sizes = [8, 64], strides = [1, 1]} : vector<32x64xf32> to vector<8x64xf32>
    %52 = vector.extract_strided_slice %50 {offsets = [8, 0], sizes = [8, 64], strides = [1, 1]} : vector<32x64xf32> to vector<8x64xf32>
    %53 = arith.maximumf %51, %52 : vector<8x64xf32>
    %54 = vector.extract_strided_slice %50 {offsets = [16, 0], sizes = [8, 64], strides = [1, 1]} : vector<32x64xf32> to vector<8x64xf32>
    %55 = vector.extract_strided_slice %50 {offsets = [24, 0], sizes = [8, 64], strides = [1, 1]} : vector<32x64xf32> to vector<8x64xf32>
    %56 = arith.maximumf %54, %55 : vector<8x64xf32>
    %57 = tpu.concatenate %53, %56 in 1 : vector<8x64xf32>, vector<8x64xf32> -> vector<8x128xf32>
    %c0_35 = arith.constant 0 : index
    %c0_36 = arith.constant 0 : index
    %58 = vector.load %arg5[%c0_35, %c0_36] : memref<128x128xf32, #tpu.memory_space<vmem>>, vector<128x128xf32>
    %cst_37 = arith.constant dense<0.000000e+00> : vector<8x128xf32>
    %59 = tpu.matmul %57, %58, %cst_37 {dimension_numbers = #tpu.dot_dimension_numbers<[1], [0], [0], [1], [0, 0, 1, 1], [], []>} : vector<8x128xf32>, vector<128x128xf32>, vector<8x128xf32> -> vector<8x128xf32>
    %c0_38 = arith.constant 0 : index
    %c0_39 = arith.constant 0 : index
    %60 = vector.load %arg6[%c0_38, %c0_39] : memref<1x128xf32, #tpu.memory_space<vmem>>, vector<1x128xf32>
    %61 = vector.broadcast %60 : vector<1x128xf32> to vector<8x128xf32>
    %62 = arith.addf %59, %61 : vector<8x128xf32>
    %c0_40 = arith.constant 0 : index
    %c0_41 = arith.constant 0 : index
    %63 = vector.load %arg7[%c0_40, %c0_41] : memref<8x128xf32, #tpu.memory_space<vmem>>, vector<8x128xf32>
    tpu.vector_store %arg7[%c0_40, %c0_41], %62 {strides = array<i32>} : memref<8x128xf32, #tpu.memory_space<vmem>>, vector<8x128xf32>,
    return
  }
  func.func @transform_0(%arg0: i32) -> (i32, i32) {
    %c0_i32 = arith.constant 0 : i32
    %c0_i32_0 = arith.constant 0 : i32
    return %arg0, %c0_i32 : i32, i32
  }
  func.func @transform_1(%arg0: i32) -> (i32, i32) {
    %c0_i32 = arith.constant 0 : i32
    %c0_i32_0 = arith.constant 0 : i32
    %c0_i32_1 = arith.constant 0 : i32
    return %c0_i32, %c0_i32_0 : i32, i32
  }
  func.func @transform_2(%arg0: i32) -> (i32, i32, i32) {
    %c0_i32 = arith.constant 0 : i32
    %c0_i32_0 = arith.constant 0 : i32
    %c0_i32_1 = arith.constant 0 : i32
    %c0_i32_2 = arith.constant 0 : i32
    return %c0_i32, %c0_i32_0, %c0_i32_1 : i32, i32, i32
  }
  func.func @transform_3(%arg0: i32) -> (i32, i32) {
    %c0_i32 = arith.constant 0 : i32
    %c0_i32_0 = arith.constant 0 : i32
    %c0_i32_1 = arith.constant 0 : i32
    return %c0_i32, %c0_i32_0 : i32, i32
  }
  func.func @transform_4(%arg0: i32) -> (i32, i32) {
    %c0_i32 = arith.constant 0 : i32
    %c0_i32_0 = arith.constant 0 : i32
    %c0_i32_1 = arith.constant 0 : i32
    return %c0_i32, %c0_i32_0 : i32, i32
  }
  func.func @transform_5(%arg0: i32) -> (i32, i32) {
    %c0_i32 = arith.constant 0 : i32
    %c0_i32_0 = arith.constant 0 : i32
    %c0_i32_1 = arith.constant 0 : i32
    return %c0_i32, %c0_i32_0 : i32, i32
  }
  func.func @transform_6(%arg0: i32) -> (i32, i32) {
    %c0_i32 = arith.constant 0 : i32
    %c0_i32_0 = arith.constant 0 : i32
    return %arg0, %c0_i32 : i32, i32
  }
}

</mosaic_0001>

<llo_original>
// kernel: cnn_classifier_forward.1
$region0: #{cnn_classifier_forward.1}
  #allocation0 [shape = 'u32[]', space=smem, size = 0x4, offset = 0x4, fixed_abs, tag = 'smem constant byte address 0x4 - core index']
  #allocation1 [shape = 'u32[144,128]{1,0:T(1,128)}', space=vmem, size = 0x12000, scoped, tag = 'internal scratch']
  #allocation2 [shape = 'f32[64,256]{1,0:T(8,128)}', space=vmem, size = 0x10000, scoped, tag = 'scratch operand']
  %s0 = inlined_call_operand.vmem [shape: f32[256,128], index: 0, kind: input, shape index: {}]
  %s1 = inlined_call_operand.vmem [shape: f32[128,512], index: 1, kind: input, shape index: {}]
  %s2 = inlined_call_operand.vmem [shape: f32[5,256,128], index: 2, kind: input, shape index: {}]
  %s3 = inlined_call_operand.vmem [shape: f32[1,128], index: 3, kind: input, shape index: {}]
  %s4 = inlined_call_operand.vmem [shape: f32[128,128], index: 4, kind: input, shape index: {}]
  %s5 = inlined_call_operand.vmem [shape: f32[1,128], index: 5, kind: input, shape index: {}]
  %s6 = inlined_call_operand.vmem [shape: f32[16,128], index: 6, kind: output, shape index: {}]
  %s7 = sld [smem:[#allocation0]]
  $region57: #{cnn_classifier_forward.1} parent=0
    _
  %s9 = ssub.s32 1, %s7
  %s10 = scalar_select 0, %s9, %s7
  loop: start=0, step=1, limit=4
  $region2: #{cnn_classifier_forward.1} parent=0 // loop_pre_header
    _
  $region3: #{cnn_classifier_forward.1} parent=0 // loop_header
    %s12 = sphi 0, %s16
    %p13 = scmp.ge.s32.totalorder %s12, 4
    %s22 = sphi 0, %s24
    %s25 = sphi 0, %s22
    %s26 = sphi 0, %s25
    %s42 = sphi 0, %s26
    %s46 = sphi 0, %s46
    %s48 = sphi 0, %s46
    %s49 = sphi 0, %s48
    %s63 = sphi 0, %s49
    %s67 = sphi 0, %s67
    %s69 = sphi 0, %s67
    %s70 = sphi 0, %s69
    %s84 = sphi 0, %s70
    %s88 = sphi 0, %s88
    %s90 = sphi 0, %s88
    %s91 = sphi 0, %s90
    %s105 = sphi 0, %s91
    %s109 = sphi 0, %s109
    %s111 = sphi 0, %s109
    %s112 = sphi 0, %s111
    %s126 = sphi 0, %s112
    %s130 = sphi 0, %s130
    %s132 = sphi 0, %s130
    %s133 = sphi 0, %s132
    %s147 = sphi 0, %s133
    %s153 = sphi 0, %s155
    %s156 = sphi 0, %s153
    %s157 = sphi 0, %s156
    %s173 = sphi 0, %s157
  $region4: #{cnn_classifier_forward.1} parent=0 // loop_header_branch
    %15 = sbr.rel (%p13) target = $region8
  $region5: #{cnn_classifier_forward.1} parent=0 // loop_body
    %s17 = ssub.s32 %s12, 1
    %s18 = ssub.s32 %s12, 2
    %s19 = sadd.s32 %s12, 1
    %s20 = ssub.s32 %s12, %s19
    %p21 = scmp.eq.s32.totalorder %s20, 0
    %s23 = sadd.s32 %s22, 1
    %s24 = scalar_select %p21, %s22, %s23
    %p27 = pneg %p21
    %p28 = scmp.eq.s32.totalorder %s12, 1
    %p29 = por %p27, %p28
    %p30 = scmp.ne.s32.totalorder %s22, %s25
    %p31 = scmp.eq.s32.totalorder %s12, 0
    %p32 = por %p30, %p31
    %p33 = scmp.ne.s32.totalorder %s22, %s25
    %p34 = scmp.eq.s32.totalorder %s17, 1
    %p35 = por %p33, %p34
    %p36 = scmp.ne.s32.totalorder %s25, %s26
    %p37 = scmp.eq.s32.totalorder %s17, 0
    %p38 = por %p36, %p37
    %p39 = scmp.ne.s32.totalorder %s25, %s26
    %p40 = scmp.eq.s32.totalorder %s18, 1
    %p41 = por %p39, %p40
    %p43 = scmp.ne.s32.totalorder %s26, %s42
    %p44 = scmp.eq.s32.totalorder %s18, 0
    %p45 = por %p43, %p44
    %s47 = sadd.s32 %s46, 1
    %p50 = scmp.eq.s32.totalorder %s12, 1
    %p51 = scmp.ne.s32.totalorder %s46, %s48
    %p52 = scmp.eq.s32.totalorder %s12, 0
    %p53 = por %p51, %p52
    %p54 = scmp.ne.s32.totalorder %s46, %s48
    %p55 = scmp.eq.s32.totalorder %s17, 1
    %p56 = por %p54, %p55
    %p57 = scmp.ne.s32.totalorder %s48, %s49
    %p58 = scmp.eq.s32.totalorder %s17, 0
    %p59 = por %p57, %p58
    %p60 = scmp.ne.s32.totalorder %s48, %s49
    %p61 = scmp.eq.s32.totalorder %s18, 1
    %p62 = por %p60, %p61
    %p64 = scmp.ne.s32.totalorder %s49, %s63
    %p65 = scmp.eq.s32.totalorder %s18, 0
    %p66 = por %p64, %p65
    %s68 = sadd.s32 %s67, 1
    %p71 = scmp.eq.s32.totalorder %s12, 1
    %p72 = scmp.ne.s32.totalorder %s67, %s69
    %p73 = scmp.eq.s32.totalorder %s12, 0
    %p74 = por %p72, %p73
    %p75 = scmp.ne.s32.totalorder %s67, %s69
    %p76 = scmp.eq.s32.totalorder %s17, 1
    %p77 = por %p75, %p76
    %p78 = scmp.ne.s32.totalorder %s69, %s70
    %p79 = scmp.eq.s32.totalorder %s17, 0
    %p80 = por %p78, %p79
    %p81 = scmp.ne.s32.totalorder %s69, %s70
    %p82 = scmp.eq.s32.totalorder %s18, 1
    %p83 = por %p81, %p82
    %p85 = scmp.ne.s32.totalorder %s70, %s84
    %p86 = scmp.eq.s32.totalorder %s18, 0
    %p87 = por %p85, %p86
    %s89 = sadd.s32 %s88, 1
    %p92 = scmp.eq.s32.totalorder %s12, 1
    %p93 = scmp.ne.s32.totalorder %s88, %s90
    %p94 = scmp.eq.s32.totalorder %s12, 0
    %p95 = por %p93, %p94
    %p96 = scmp.ne.s32.totalorder %s88, %s90
    %p97 = scmp.eq.s32.totalorder %s17, 1
    %p98 = por %p96, %p97
    %p99 = scmp.ne.s32.totalorder %s90, %s91
    %p100 = scmp.eq.s32.totalorder %s17, 0
    %p101 = por %p99, %p100
    %p102 = scmp.ne.s32.totalorder %s90, %s91
    %p103 = scmp.eq.s32.totalorder %s18, 1
    %p104 = por %p102, %p103
    %p106 = scmp.ne.s32.totalorder %s91, %s105
    %p107 = scmp.eq.s32.totalorder %s18, 0
    %p108 = por %p106, %p107
    %s110 = sadd.s32 %s109, 1
    %p113 = scmp.eq.s32.totalorder %s12, 1
    %p114 = scmp.ne.s32.totalorder %s109, %s111
    %p115 = scmp.eq.s32.totalorder %s12, 0
    %p116 = por %p114, %p115
    %p117 = scmp.ne.s32.totalorder %s109, %s111
    %p118 = scmp.eq.s32.totalorder %s17, 1
    %p119 = por %p117, %p118
    %p120 = scmp.ne.s32.totalorder %s111, %s112
    %p121 = scmp.eq.s32.totalorder %s17, 0
    %p122 = por %p120, %p121
    %p123 = scmp.ne.s32.totalorder %s111, %s112
    %p124 = scmp.eq.s32.totalorder %s18, 1
    %p125 = por %p123, %p124
    %p127 = scmp.ne.s32.totalorder %s112, %s126
    %p128 = scmp.eq.s32.totalorder %s18, 0
    %p129 = por %p127, %p128
    %s131 = sadd.s32 %s130, 1
    %p134 = scmp.eq.s32.totalorder %s12, 1
    %p135 = scmp.ne.s32.totalorder %s130, %s132
    %p136 = scmp.eq.s32.totalorder %s12, 0
    %p137 = por %p135, %p136
    %p138 = scmp.ne.s32.totalorder %s130, %s132
    %p139 = scmp.eq.s32.totalorder %s17, 1
    %p140 = por %p138, %p139
    %p141 = scmp.ne.s32.totalorder %s132, %s133
    %p142 = scmp.eq.s32.totalorder %s17, 0
    %p143 = por %p141, %p142
    %p144 = scmp.ne.s32.totalorder %s132, %s133
    %p145 = scmp.eq.s32.totalorder %s18, 1
    %p146 = por %p144, %p145
    %p148 = scmp.ne.s32.totalorder %s133, %s147
    %p149 = scmp.eq.s32.totalorder %s18, 0
    %p150 = por %p148, %p149
    %s151 = ssub.s32 %s12, %s19
    %p152 = scmp.eq.s32.totalorder %s151, 0
    %s154 = sadd.s32 %s153, 1
    %s155 = scalar_select %p152, %s153, %s154
    %p158 = pneg %p152
    %p159 = scmp.eq.s32.totalorder %s12, 1
    %p160 = por %p158, %p159
    %p161 = scmp.ne.s32.totalorder %s153, %s156
    %p162 = scmp.eq.s32.totalorder %s12, 0
    %p163 = por %p161, %p162
    %p164 = scmp.ne.s32.totalorder %s153, %s156
    %p165 = scmp.eq.s32.totalorder %s17, 1
    %p166 = por %p164, %p165
    %p167 = scmp.ne.s32.totalorder %s156, %s157
    %p168 = scmp.eq.s32.totalorder %s17, 0
    %p169 = por %p167, %p168
    %p170 = scmp.ne.s32.totalorder %s156, %s157
    %p171 = scmp.eq.s32.totalorder %s18, 1
    %p172 = por %p170, %p171
    %p174 = scmp.ne.s32.totalorder %s157, %s173
    %p175 = scmp.eq.s32.totalorder %s18, 0
    %p176 = por %p174, %p175
    %p177 = scmp.le.s32.totalorder 1, %s12
    %p178 = scmp.lt.s32.totalorder %s12, 3
    %p179 = pnand %p177, %p178
    %p180 = pneg %p179
    // Predicated region
    $region9: #{cnn_classifier_forward.1} parent=5 // pred_check
      _
    $region10: #{cnn_classifier_forward.1} parent=5 // pred_check_branch
      %182 = sbr.rel (%p179) target = $region12
    $region11: #{cnn_classifier_forward.1} parent=5 // pred_region
      %s183 = ssub.s32 %s12, 1
      // Predicated region
      $region13: #{cnn_classifier_forward.1} parent=11 // pred_check
        %p184 = pneg %p59
      $region14: #{cnn_classifier_forward.1} parent=11 // pred_check_branch
        %186 = sbr.rel (%p184) target = $region16
      $region15: #{cnn_classifier_forward.1} parent=11 // pred_region
        _
      $region16: #{cnn_classifier_forward.1} parent=11 // pred_fallthru
        _
      // Predicated region
      $region17: #{cnn_classifier_forward.1} parent=11 // pred_check
        %p187 = pneg %p80
      $region18: #{cnn_classifier_forward.1} parent=11 // pred_check_branch
        %189 = sbr.rel (%p187) target = $region20
      $region19: #{cnn_classifier_forward.1} parent=11 // pred_region
        _
      $region20: #{cnn_classifier_forward.1} parent=11 // pred_fallthru
        _
      // Predicated region
      $region21: #{cnn_classifier_forward.1} parent=11 // pred_check
        %p190 = pneg %p101
      $region22: #{cnn_classifier_forward.1} parent=11 // pred_check_branch
        %192 = sbr.rel (%p190) target = $region24
      $region23: #{cnn_classifier_forward.1} parent=11 // pred_region
        _
      $region24: #{cnn_classifier_forward.1} parent=11 // pred_fallthru
        _
      // Predicated region
      $region25: #{cnn_classifier_forward.1} parent=11 // pred_check
        %p193 = pneg %p122
      $region26: #{cnn_classifier_forward.1} parent=11 // pred_check_branch
        %195 = sbr.rel (%p193) target = $region28
      $region27: #{cnn_classifier_forward.1} parent=11 // pred_region
        _
      $region28: #{cnn_classifier_forward.1} parent=11 // pred_fallthru
        _
      // Predicated region
      $region29: #{cnn_classifier_forward.1} parent=11 // pred_check
        %p196 = pneg %p143
      $region30: #{cnn_classifier_forward.1} parent=11 // pred_check_branch
        %198 = sbr.rel (%p196) target = $region32
      $region31: #{cnn_classifier_forward.1} parent=11 // pred_region
        _
      $region32: #{cnn_classifier_forward.1} parent=11 // pred_fallthru
        _
    $region12: #{cnn_classifier_forward.1} parent=5 // pred_fallthru
      _
    %p199 = scmp.lt.s32.totalorder %s12, 2
    // Predicated region
    $region33: #{cnn_classifier_forward.1} parent=5 // pred_check
      %p200 = pneg %p199
    $region34: #{cnn_classifier_forward.1} parent=5 // pred_check_branch
      %202 = sbr.rel (%p200) target = $region36
    $region35: #{cnn_classifier_forward.1} parent=5 // pred_region
      // Predicated region
      $region37: #{cnn_classifier_forward.1} parent=35 // pred_check
        %p203 = pneg %p32
      $region38: #{cnn_classifier_forward.1} parent=35 // pred_check_branch
        %205 = sbr.rel (%p203) target = $region40
      $region39: #{cnn_classifier_forward.1} parent=35 // pred_region
        %s206 = smul.u32 16, %s12
        %p207 = scmp.lt.s32.totalorder %s206, 31
        %s208 = scalar_select %p207, %s206, 31
        %s209 = smul.addr %s208, 8
        %s210 = scalar_lea.vmem %s0, %s209
        %s211 = smul.u32 16, %s12
      $region40: #{cnn_classifier_forward.1} parent=35 // pred_fallthru
        _
    $region36: #{cnn_classifier_forward.1} parent=5 // pred_fallthru
      _
    %p212 = scmp.le.s32.totalorder 1, %s12
    %p213 = scmp.lt.s32.totalorder %s12, 3
    %p214 = pnand %p212, %p213
    %p215 = pneg %p214
    // Predicated region
    $region41: #{cnn_classifier_forward.1} parent=5 // pred_check
      _
    $region42: #{cnn_classifier_forward.1} parent=5 // pred_check_branch
      %217 = sbr.rel (%p214) target = $region44
    $region43: #{cnn_classifier_forward.1} parent=5 // pred_region
      %s218 = ssub.s32 %s12, 1
      %s219 = smul.u32 16, %s17
      %p220 = scmp.lt.s32.totalorder %s219, 31
      %s221 = scalar_select %p220, %s219, 31
      %s222 = smul.addr %s221, 8
      %s223 = scalar_lea.vmem %s0, %s222
      %p224 = pneg %p38
      %p225 = pneg %p35
      %p226 = pneg %p59
      %p227 = pneg %p56
      %p228 = pneg %p80
      %p229 = pneg %p77
      %p230 = pneg %p101
      %p231 = pneg %p98
      %p232 = pneg %p122
      %p233 = pneg %p119
      %p234 = pneg %p143
      %p235 = pneg %p140
      %p236 = pneg %p169
      %p237 = pneg %p166
      %p238 = scmp.lt.s32.totalorder %s17, 1
      %s239 = scalar_select %p238, %s17, 1
      %s240 = smul.addr %s239, 8
      %s241 = scalar_lea.vmem %s6, %s240
      %s242 = smul.u32 16, %s17
      %p243 = scmp.lt.s32.totalorder %s242, 31
      %s244 = scalar_select %p243, %s242, 31
      %s245 = smul.addr %s244, 8
      %s246 = scalar_lea.vmem %s0, %s245
      %s247 = smul.u32 16, %s17
      %p248 = scmp.lt.s32.totalorder %s17, 1
      %s249 = scalar_select %p248, %s17, 1
      %s250 = smul.addr %s249, 8
      %s251 = scalar_lea.vmem %s6, %s250
      %v252 = vld [vmem:[%s246] sm:$0xff]
      %v253 = vld [vmem:[%s246 + $0x8] sm:$0xff]
      %v254 = vld [vmem:[%s246 + $0x10] sm:$0xff]
      %v255 = vld [vmem:[%s246 + $0x18] sm:$0xff]
      %v256 = vld [vmem:[%s246 + $0x20] sm:$0xff]
      %v257 = vld [vmem:[%s246 + $0x28] sm:$0xff]
      %v258 = vld [vmem:[%s246 + $0x30] sm:$0xff]
      %v259 = vld [vmem:[%s246 + $0x38] sm:$0xff]
      %v260 = vld [vmem:[%s246 + $0x40] sm:$0xff]
      %v261 = vld [vmem:[%s246 + $0x48] sm:$0xff]
      %v262 = vld [vmem:[%s246 + $0x50] sm:$0xff]
      %v263 = vld [vmem:[%s246 + $0x58] sm:$0xff]
      %v264 = vld [vmem:[%s246 + $0x60] sm:$0xff]
      %v265 = vld [vmem:[%s246 + $0x68] sm:$0xff]
      %v266 = vld [vmem:[%s246 + $0x70] sm:$0xff]
      %v267 = vld [vmem:[%s246 + $0x78] sm:$0xff]
      %v268 = vld [vmem:[%s1] sm:$0xff]
      %v269 = vld [vmem:[%s1 + $0x8] sm:$0xff]
      %v270 = vld [vmem:[%s1 + $0x20] sm:$0xff]
      %v271 = vld [vmem:[%s1 + $0x28] sm:$0xff]
      %v272 = vld [vmem:[%s1 + $0x40] sm:$0xff]
      %v273 = vld [vmem:[%s1 + $0x48] sm:$0xff]
      %v274 = vld [vmem:[%s1 + $0x60] sm:$0xff]
      %v275 = vld [vmem:[%s1 + $0x68] sm:$0xff]
      %v276 = vld [vmem:[%s1 + $0x80] sm:$0xff]
      %v277 = vld [vmem:[%s1 + $0x88] sm:$0xff]
      %v278 = vld [vmem:[%s1 + $0xa0] sm:$0xff]
      %v279 = vld [vmem:[%s1 + $0xa8] sm:$0xff]
      %v280 = vld [vmem:[%s1 + $0xc0] sm:$0xff]
      %v281 = vld [vmem:[%s1 + $0xc8] sm:$0xff]
      %v282 = vld [vmem:[%s1 + $0xe0] sm:$0xff]
      %v283 = vld [vmem:[%s1 + $0xe8] sm:$0xff]
      %v284 = vld [vmem:[%s1 + $0x100] sm:$0xff]
      %v285 = vld [vmem:[%s1 + $0x108] sm:$0xff]
      %v286 = vld [vmem:[%s1 + $0x120] sm:$0xff]
      %v287 = vld [vmem:[%s1 + $0x128] sm:$0xff]
      %v288 = vld [vmem:[%s1 + $0x140] sm:$0xff]
      %v289 = vld [vmem:[%s1 + $0x148] sm:$0xff]
      %v290 = vld [vmem:[%s1 + $0x160] sm:$0xff]
      %v291 = vld [vmem:[%s1 + $0x168] sm:$0xff]
      %v292 = vld [vmem:[%s1 + $0x180] sm:$0xff]
      %v293 = vld [vmem:[%s1 + $0x188] sm:$0xff]
      %v294 = vld [vmem:[%s1 + $0x1a0] sm:$0xff]
      %v295 = vld [vmem:[%s1 + $0x1a8] sm:$0xff]
      %v296 = vld [vmem:[%s1 + $0x1c0] sm:$0xff]
      %v297 = vld [vmem:[%s1 + $0x1c8] sm:$0xff]
      %v298 = vld [vmem:[%s1 + $0x1e0] sm:$0xff]
      %v299 = vld [vmem:[%s1 + $0x1e8] sm:$0xff]
      %300 = vmatprep.subr.mxu0 %v269
      %301 = vmatpush1.msra.mxu0 %v268
      %302 = vmatprep.subr.mxu0 %v271
      %303 = vmatpush1.msra.mxu0 %v270
      %304 = vmatprep.subr.mxu0 %v273
      %305 = vmatpush1.msra.mxu0 %v272
      %306 = vmatprep.subr.mxu0 %v275
      %307 = vmatpush1.msra.mxu0 %v274
      %308 = vmatprep.subr.mxu0 %v277
      %309 = vmatpush1.msra.mxu0 %v276
      %310 = vmatprep.subr.mxu0 %v279
      %311 = vmatpush1.msra.mxu0 %v278
      %312 = vmatprep.subr.mxu0 %v281
      %313 = vmatpush1.msra.mxu0 %v280
      %314 = vmatprep.subr.mxu0 %v283
      %315 = vmatpush1.msra.mxu0 %v282
      %316 = vmatprep.subr.mxu0 %v285
      %317 = vmatpush1.msra.mxu0 %v284
      %318 = vmatprep.subr.mxu0 %v287
      %319 = vmatpush1.msra.mxu0 %v286
      %320 = vmatprep.subr.mxu0 %v289
      %321 = vmatpush1.msra.mxu0 %v288
      %322 = vmatprep.subr.mxu0 %v291
      %323 = vmatpush1.msra.mxu0 %v290
      %324 = vmatprep.subr.mxu0 %v293
      %325 = vmatpush1.msra.mxu0 %v292
      %326 = vmatprep.subr.mxu0 %v295
      %327 = vmatpush1.msra.mxu0 %v294
      %328 = vmatprep.subr.mxu0 %v297
      %329 = vmatpush1.msra.mxu0 %v296
      %330 = vmatprep.subr.mxu0 %v299
      %331 = vmatpush1.msra.mxu0 %v298
      %332 = vmatprep.subr.mxu0 0.0
      %333 = vmatpush1.msra.mxu0 0.0
      %334 = vmatprep.subr.mxu0 0.0
      %335 = vmatpush1.msra.mxu0 0.0
      %336 = vmatprep.subr.mxu0 0.0
      %337 = vmatpush1.msra.mxu0 0.0
      %338 = vmatprep.subr.mxu0 0.0
      %339 = vmatpush1.msra.mxu0 0.0
      %340 = vmatprep.subr.mxu0 0.0
      %341 = vmatpush1.msra.mxu0 0.0
      %342 = vmatprep.subr.mxu0 0.0
      %343 = vmatpush1.msra.mxu0 0.0
      %344 = vmatprep.subr.mxu0 0.0
      %345 = vmatpush1.msra.mxu0 0.0
      %346 = vmatprep.subr.mxu0 0.0
      %347 = vmatpush1.msra.mxu0 0.0
      %348 = vmatprep.subr.mxu0 0.0
      %349 = vmatpush1.msra.mxu0 0.0
      %350 = vmatprep.subr.mxu0 0.0
      %351 = vmatpush1.msra.mxu0 0.0
      %352 = vmatprep.subr.mxu0 0.0
      %353 = vmatpush1.msra.mxu0 0.0
      %354 = vmatprep.subr.mxu0 0.0
      %355 = vmatpush1.msra.mxu0 0.0
      %356 = vmatprep.subr.mxu0 0.0
      %357 = vmatpush1.msra.mxu0 0.0
      %358 = vmatprep.subr.mxu0 0.0
      %359 = vmatpush1.msra.mxu0 0.0
      %360 = vmatprep.subr.mxu0 0.0
      %361 = vmatpush1.msra.mxu0 0.0
      %362 = vmatprep.subr.mxu0 0.0
      %363 = vmatpush1.msra.mxu0 0.0
      %364 = vmatprep.mubr.f32.mxu0 0.0
      %365 = vmatmul.mubr.f32.gmra.mrb[0].mxu0 %v252
      %v366 = vpop.f32.mrb[0].mxu0
      %v367 = vadd.f32 0.0, %v366
      %v368 = vpop.f32.mrb[0].mxu0
      %v369 = vadd.f32 0.0, %v368
      %370 = vmatprep.mubr.f32.mxu0 0.0
      %371 = vmatmul.mubr.f32.gmra.mrb[0].mxu0 %v253
      %v372 = vpop.f32.mrb[0].mxu0
      %v373 = vadd.f32 0.0, %v372
      %v374 = vpop.f32.mrb[0].mxu0
      %v375 = vadd.f32 0.0, %v374
      %376 = vmatprep.mubr.f32.mxu0 0.0
      %377 = vmatmul.mubr.f32.gmra.mrb[0].mxu0 %v254
      %v378 = vpop.f32.mrb[0].mxu0
      %v379 = vadd.f32 0.0, %v378
      %v380 = vpop.f32.mrb[0].mxu0
      %v381 = vadd.f32 0.0, %v380
      %382 = vmatprep.mubr.f32.mxu0 0.0
      %383 = vmatmul.mubr.f32.gmra.mrb[0].mxu0 %v255
      %v384 = vpop.f32.mrb[0].mxu0
      %v385 = vadd.f32 0.0, %v384
      %v386 = vpop.f32.mrb[0].mxu0
      %v387 = vadd.f32 0.0, %v386
      %388 = vmatprep.mubr.f32.mxu0 0.0
      %389 = vmatmul.mubr.f32.gmra.mrb[0].mxu0 %v256
      %v390 = vpop.f32.mrb[0].mxu0
      %v391 = vadd.f32 0.0, %v390
      %v392 = vpop.f32.mrb[0].mxu0
      %v393 = vadd.f32 0.0, %v392
      %394 = vmatprep.mubr.f32.mxu0 0.0
      %395 = vmatmul.mubr.f32.gmra.mrb[0].mxu0 %v257
      %v396 = vpop.f32.mrb[0].mxu0
      %v397 = vadd.f32 0.0, %v396
      %v398 = vpop.f32.mrb[0].mxu0
      %v399 = vadd.f32 0.0, %v398
      %400 = vmatprep.mubr.f32.mxu0 0.0
      %401 = vmatmul.mubr.f32.gmra.mrb[0].mxu0 %v258
      %v402 = vpop.f32.mrb[0].mxu0
      %v403 = vadd.f32 0.0, %v402
      %v404 = vpop.f32.mrb[0].mxu0
      %v405 = vadd.f32 0.0, %v404
      %406 = vmatprep.mubr.f32.mxu0 0.0
      %407 = vmatmul.mubr.f32.gmra.mrb[0].mxu0 %v259
      %v408 = vpop.f32.mrb[0].mxu0
      %v409 = vadd.f32 0.0, %v408
      %v410 = vpop.f32.mrb[0].mxu0
      %v411 = vadd.f32 0.0, %v410
      %412 = vmatprep.mubr.f32.mxu0 0.0
      %413 = vmatmul.mubr.f32.gmra.mrb[0].mxu0 %v260
      %v414 = vpop.f32.mrb[0].mxu0
      %v415 = vadd.f32 0.0, %v414
      %v416 = vpop.f32.mrb[0].mxu0
      %v417 = vadd.f32 0.0, %v416
      %418 = vmatprep.mubr.f32.mxu0 0.0
      %419 = vmatmul.mubr.f32.gmra.mrb[0].mxu0 %v261
      %v420 = vpop.f32.mrb[0].mxu0
      %v421 = vadd.f32 0.0, %v420
      %v422 = vpop.f32.mrb[0].mxu0
      %v423 = vadd.f32 0.0, %v422
      %424 = vmatprep.mubr.f32.mxu0 0.0
      %425 = vmatmul.mubr.f32.gmra.mrb[0].mxu0 %v262
      %v426 = vpop.f32.mrb[0].mxu0
      %v427 = vadd.f32 0.0, %v426
      %v428 = vpop.f32.mrb[0].mxu0
      %v429 = vadd.f32 0.0, %v428
      %430 = vmatprep.mubr.f32.mxu0 0.0
      %431 = vmatmul.mubr.f32.gmra.mrb[0].mxu0 %v263
      %v432 = vpop.f32.mrb[0].mxu0
      %v433 = vadd.f32 0.0, %v432
      %v434 = vpop.f32.mrb[0].mxu0
      %v435 = vadd.f32 0.0, %v434
      %436 = vmatprep.mubr.f32.mxu0 0.0
      %437 = vmatmul.mubr.f32.gmra.mrb[0].mxu0 %v264
      %v438 = vpop.f32.mrb[0].mxu0
      %v439 = vadd.f32 0.0, %v438
      %v440 = vpop.f32.mrb[0].mxu0
      %v441 = vadd.f32 0.0, %v440
      %442 = vmatprep.mubr.f32.mxu0 0.0
      %443 = vmatmul.mubr.f32.gmra.mrb[0].mxu0 %v265
      %v444 = vpop.f32.mrb[0].mxu0
      %v445 = vadd.f32 0.0, %v444
      %v446 = vpop.f32.mrb[0].mxu0
      %v447 = vadd.f32 0.0, %v446
      %448 = vmatprep.mubr.f32.mxu0 0.0
      %449 = vmatmul.mubr.f32.gmra.mrb[0].mxu0 %v266
      %v450 = vpop.f32.mrb[0].mxu0
      %v451 = vadd.f32 0.0, %v450
      %v452 = vpop.f32.mrb[0].mxu0
      %v453 = vadd.f32 0.0, %v452
      %454 = vmatprep.mubr.f32.mxu0 0.0
      %455 = vmatmul.mubr.f32.gmra.mrb[0].mxu0 %v267
      %v456 = vpop.f32.mrb[0].mxu0
      %v457 = vadd.f32 0.0, %v456
      %v458 = vpop.f32.mrb[0].mxu0
      %v459 = vadd.f32 0.0, %v458
      %460 = vdwg.mxu0
      %v461 = vmax.f32 %v367, %v415
      %v462 = vmax.f32 %v369, %v417
      %v463 = vmax.f32 %v373, %v421
      %v464 = vmax.f32 %v375, %v423
      %v465 = vmax.f32 %v379, %v427
      %v466 = vmax.f32 %v381, %v429
      %v467 = vmax.f32 %v385, %v433
      %v468 = vmax.f32 %v387, %v435
      %v469 = vmax.f32 %v391, %v439
      %v470 = vmax.f32 %v393, %v441
      %v471 = vmax.f32 %v397, %v445
      %v472 = vmax.f32 %v399, %v447
      %v473 = vmax.f32 %v403, %v451
      %v474 = vmax.f32 %v405, %v453
      %v475 = vmax.f32 %v409, %v457
      %v476 = vmax.f32 %v411, %v459
      %v477 = vmax.f32 %v461, 0.0
      %v478 = vmax.f32 %v462, 0.0
      %v479 = vmax.f32 %v463, 0.0
      %v480 = vmax.f32 %v464, 0.0
      %v481 = vmax.f32 %v465, 0.0
      %v482 = vmax.f32 %v466, 0.0
      %v483 = vmax.f32 %v467, 0.0
      %v484 = vmax.f32 %v468, 0.0
      %v485 = vmax.f32 %v469, 0.0
      %v486 = vmax.f32 %v470, 0.0
      %v487 = vmax.f32 %v471, 0.0
      %v488 = vmax.f32 %v472, 0.0
      %v489 = vmax.f32 %v473, 0.0
      %v490 = vmax.f32 %v474, 0.0
      %v491 = vmax.f32 %v475, 0.0
      %v492 = vmax.f32 %v476, 0.0
      %v493 = vld [vmem:[%s1 + $0x10] sm:$0xff]
      %v494 = vld [vmem:[%s1 + $0x18] sm:$0xff]
      %v495 = vld [vmem:[%s1 + $0x30] sm:$0xff]
      %v496 = vld [vmem:[%s1 + $0x38] sm:$0xff]
      %v497 = vld [vmem:[%s1 + $0x50] sm:$0xff]
      %v498 = vld [vmem:[%s1 + $0x58] sm:$0xff]
      %v499 = vld [vmem:[%s1 + $0x70] sm:$0xff]
      %v500 = vld [vmem:[%s1 + $0x78] sm:$0xff]
      %v501 = vld [vmem:[%s1 + $0x90] sm:$0xff]
      %v502 = vld [vmem:[%s1 + $0x98] sm:$0xff]
      %v503 = vld [vmem:[%s1 + $0xb0] sm:$0xff]
      %v504 = vld [vmem:[%s1 + $0xb8] sm:$0xff]
      %v505 = vld [vmem:[%s1 + $0xd0] sm:$0xff]
      %v506 = vld [vmem:[%s1 + $0xd8] sm:$0xff]
      %v507 = vld [vmem:[%s1 + $0xf0] sm:$0xff]
      %v508 = vld [vmem:[%s1 + $0xf8] sm:$0xff]
      %v509 = vld [vmem:[%s1 + $0x110] sm:$0xff]
      %v510 = vld [vmem:[%s1 + $0x118] sm:$0xff]
      %v511 = vld [vmem:[%s1 + $0x130] sm:$0xff]
      %v512 = vld [vmem:[%s1 + $0x138] sm:$0xff]
      %v513 = vld [vmem:[%s1 + $0x150] sm:$0xff]
      %v514 = vld [vmem:[%s1 + $0x158] sm:$0xff]
      %v515 = vld [vmem:[%s1 + $0x170] sm:$0xff]
      %v516 = vld [vmem:[%s1 + $0x178] sm:$0xff]
      %v517 = vld [vmem:[%s1 + $0x190] sm:$0xff]
      %v518 = vld [vmem:[%s1 + $0x198] sm:$0xff]
      %v519 = vld [vmem:[%s1 + $0x1b0] sm:$0xff]
      %v520 = vld [vmem:[%s1 + $0x1b8] sm:$0xff]
      %v521 = vld [vmem:[%s1 + $0x1d0] sm:$0xff]
      %v522 = vld [vmem:[%s1 + $0x1d8] sm:$0xff]
      %v523 = vld [vmem:[%s1 + $0x1f0] sm:$0xff]
      %v524 = vld [vmem:[%s1 + $0x1f8] sm:$0xff]
      %525 = vmatprep.subr.mxu0 %v494
      %526 = vmatpush1.msra.mxu0 %v493
      %527 = vmatprep.subr.mxu0 %v496
      %528 = vmatpush1.msra.mxu0 %v495
      %529 = vmatprep.subr.mxu0 %v498
      %530 = vmatpush1.msra.mxu0 %v497
      %531 = vmatprep.subr.mxu0 %v500
      %532 = vmatpush1.msra.mxu0 %v499
      %533 = vmatprep.subr.mxu0 %v502
      %534 = vmatpush1.msra.mxu0 %v501
      %535 = vmatprep.subr.mxu0 %v504
      %536 = vmatpush1.msra.mxu0 %v503
      %537 = vmatprep.subr.mxu0 %v506
      %538 = vmatpush1.msra.mxu0 %v505
      %539 = vmatprep.subr.mxu0 %v508
      %540 = vmatpush1.msra.mxu0 %v507
      %541 = vmatprep.subr.mxu0 %v510
      %542 = vmatpush1.msra.mxu0 %v509
      %543 = vmatprep.subr.mxu0 %v512
      %544 = vmatpush1.msra.mxu0 %v511
      %545 = vmatprep.subr.mxu0 %v514
      %546 = vmatpush1.msra.mxu0 %v513
      %547 = vmatprep.subr.mxu0 %v516
      %548 = vmatpush1.msra.mxu0 %v515
      %549 = vmatprep.subr.mxu0 %v518
      %550 = vmatpush1.msra.mxu0 %v517
      %551 = vmatprep.subr.mxu0 %v520
      %552 = vmatpush1.msra.mxu0 %v519
      %553 = vmatprep.subr.mxu0 %v522
      %554 = vmatpush1.msra.mxu0 %v521
      %555 = vmatprep.subr.mxu0 %v524
      %556 = vmatpush1.msra.mxu0 %v523
      %557 = vmatprep.subr.mxu0 0.0
      %558 = vmatpush1.msra.mxu0 0.0
      %559 = vmatprep.subr.mxu0 0.0
      %560 = vmatpush1.msra.mxu0 0.0
      %561 = vmatprep.subr.mxu0 0.0
      %562 = vmatpush1.msra.mxu0 0.0
      %563 = vmatprep.subr.mxu0 0.0
      %564 = vmatpush1.msra.mxu0 0.0
      %565 = vmatprep.subr.mxu0 0.0
      %566 = vmatpush1.msra.mxu0 0.0
      %567 = vmatprep.subr.mxu0 0.0
      %568 = vmatpush1.msra.mxu0 0.0
      %569 = vmatprep.subr.mxu0 0.0
      %570 = vmatpush1.msra.mxu0 0.0
      %571 = vmatprep.subr.mxu0 0.0
      %572 = vmatpush1.msra.mxu0 0.0
      %573 = vmatprep.subr.mxu0 0.0
      %574 = vmatpush1.msra.mxu0 0.0
      %575 = vmatprep.subr.mxu0 0.0
      %576 = vmatpush1.msra.mxu0 0.0
      %577 = vmatprep.subr.mxu0 0.0
      %578 = vmatpush1.msra.mxu0 0.0
      %579 = vmatprep.subr.mxu0 0.0
      %580 = vmatpush1.msra.mxu0 0.0
      %581 = vmatprep.subr.mxu0 0.0
      %582 = vmatpush1.msra.mxu0 0.0
      %583 = vmatprep.subr.mxu0 0.0
      %584 = vmatpush1.msra.mxu0 0.0
      %585 = vmatprep.subr.mxu0 0.0
      %586 = vmatpush1.msra.mxu0 0.0
      %587 = vmatprep.subr.mxu0 0.0
      %588 = vmatpush1.msra.mxu0 0.0
      %589 = vmatprep.mubr.f32.mxu0 0.0
      %590 = vmatmul.mubr.f32.gmra.mrb[0].mxu0 %v252
      %v591 = vpop.f32.mrb[0].mxu0
      %v592 = vadd.f32 0.0, %v591
      %v593 = vpop.f32.mrb[0].mxu0
      %v594 = vadd.f32 0.0, %v593
      %595 = vmatprep.mubr.f32.mxu0 0.0
      %596 = vmatmul.mubr.f32.gmra.mrb[0].mxu0 %v253
      %v597 = vpop.f32.mrb[0].mxu0
      %v598 = vadd.f32 0.0, %v597
      %v599 = vpop.f32.mrb[0].mxu0
      %v600 = vadd.f32 0.0, %v599
      %601 = vmatprep.mubr.f32.mxu0 0.0
      %602 = vmatmul.mubr.f32.gmra.mrb[0].mxu0 %v254
      %v603 = vpop.f32.mrb[0].mxu0
      %v604 = vadd.f32 0.0, %v603
      %v605 = vpop.f32.mrb[0].mxu0
      %v606 = vadd.f32 0.0, %v605
      %607 = vmatprep.mubr.f32.mxu0 0.0
      %608 = vmatmul.mubr.f32.gmra.mrb[0].mxu0 %v255
      %v609 = vpop.f32.mrb[0].mxu0
      %v610 = vadd.f32 0.0, %v609
      %v611 = vpop.f32.mrb[0].mxu0
      %v612 = vadd.f32 0.0, %v611
      %613 = vmatprep.mubr.f32.mxu0 0.0
      %614 = vmatmul.mubr.f32.gmra.mrb[0].mxu0 %v256
      %v615 = vpop.f32.mrb[0].mxu0
      %v616 = vadd.f32 0.0, %v615
      %v617 = vpop.f32.mrb[0].mxu0
      %v618 = vadd.f32 0.0, %v617
      %619 = vmatprep.mubr.f32.mxu0 0.0
      %620 = vmatmul.mubr.f32.gmra.mrb[0].mxu0 %v257
      %v621 = vpop.f32.mrb[0].mxu0
      %v622 = vadd.f32 0.0, %v621
      %v623 = vpop.f32.mrb[0].mxu0
      %v624 = vadd.f32 0.0, %v623
      %625 = vmatprep.mubr.f32.mxu0 0.0
      %626 = vmatmul.mubr.f32.gmra.mrb[0].mxu0 %v258
      %v627 = vpop.f32.mrb[0].mxu0
      %v628 = vadd.f32 0.0, %v627
      %v629 = vpop.f32.mrb[0].mxu0
      %v630 = vadd.f32 0.0, %v629
      %631 = vmatprep.mubr.f32.mxu0 0.0
      %632 = vmatmul.mubr.f32.gmra.mrb[0].mxu0 %v259
      %v633 = vpop.f32.mrb[0].mxu0
      %v634 = vadd.f32 0.0, %v633
      %v635 = vpop.f32.mrb[0].mxu0
      %v636 = vadd.f32 0.0, %v635
      %637 = vmatprep.mubr.f32.mxu0 0.0
      %638 = vmatmul.mubr.f32.gmra.mrb[0].mxu0 %v260
      %v639 = vpop.f32.mrb[0].mxu0
      %v640 = vadd.f32 0.0, %v639
      %v641 = vpop.f32.mrb[0].mxu0
      %v642 = vadd.f32 0.0, %v641
      %643 = vmatprep.mubr.f32.mxu0 0.0
      %644 = vmatmul.mubr.f32.gmra.mrb[0].mxu0 %v261
      %v645 = vpop.f32.mrb[0].mxu0
      %v646 = vadd.f32 0.0, %v645
      %v647 = vpop.f32.mrb[0].mxu0
      %v648 = vadd.f32 0.0, %v647
      %649 = vmatprep.mubr.f32.mxu0 0.0
      %650 = vmatmul.mubr.f32.gmra.mrb[0].mxu0 %v262
      %v651 = vpop.f32.mrb[0].mxu0
      %v652 = vadd.f32 0.0, %v651
      %v653 = vpop.f32.mrb[0].mxu0
      %v654 = vadd.f32 0.0, %v653
      %655 = vmatprep.mubr.f32.mxu0 0.0
      %656 = vmatmul.mubr.f32.gmra.mrb[0].mxu0 %v263
      %v657 = vpop.f32.mrb[0].mxu0
      %v658 = vadd.f32 0.0, %v657
      %v659 = vpop.f32.mrb[0].mxu0
      %v660 = vadd.f32 0.0, %v659
      %661 = vmatprep.mubr.f32.mxu0 0.0
      %662 = vmatmul.mubr.f32.gmra.mrb[0].mxu0 %v264
      %v663 = vpop.f32.mrb[0].mxu0
      %v664 = vadd.f32 0.0, %v663
      %v665 = vpop.f32.mrb[0].mxu0
      %v666 = vadd.f32 0.0, %v665
      %667 = vmatprep.mubr.f32.mxu0 0.0
      %668 = vmatmul.mubr.f32.gmra.mrb[0].mxu0 %v265
      %v669 = vpop.f32.mrb[0].mxu0
      %v670 = vadd.f32 0.0, %v669
      %v671 = vpop.f32.mrb[0].mxu0
      %v672 = vadd.f32 0.0, %v671
      %673 = vmatprep.mubr.f32.mxu0 0.0
      %674 = vmatmul.mubr.f32.gmra.mrb[0].mxu0 %v266
      %v675 = vpop.f32.mrb[0].mxu0
      %v676 = vadd.f32 0.0, %v675
      %v677 = vpop.f32.mrb[0].mxu0
      %v678 = vadd.f32 0.0, %v677
      %679 = vmatprep.mubr.f32.mxu0 0.0
      %680 = vmatmul.mubr.f32.gmra.mrb[0].mxu0 %v267
      %v681 = vpop.f32.mrb[0].mxu0
      %v682 = vadd.f32 0.0, %v681
      %v683 = vpop.f32.mrb[0].mxu0
      %v684 = vadd.f32 0.0, %v683
      %685 = vdwg.mxu0
      %v686 = vmax.f32 %v592, %v640
      %v687 = vmax.f32 %v594, %v642
      %v688 = vmax.f32 %v598, %v646
      %v689 = vmax.f32 %v600, %v648
      %v690 = vmax.f32 %v604, %v652
      %v691 = vmax.f32 %v606, %v654
      %v692 = vmax.f32 %v610, %v658
      %v693 = vmax.f32 %v612, %v660
      %v694 = vmax.f32 %v616, %v664
      %v695 = vmax.f32 %v618, %v666
      %v696 = vmax.f32 %v622, %v670
      %v697 = vmax.f32 %v624, %v672
      %v698 = vmax.f32 %v628, %v676
      %v699 = vmax.f32 %v630, %v678
      %v700 = vmax.f32 %v634, %v682
      %v701 = vmax.f32 %v636, %v684
      %v702 = vmax.f32 %v686, 0.0
      %v703 = vmax.f32 %v687, 0.0
      %v704 = vmax.f32 %v688, 0.0
      %v705 = vmax.f32 %v689, 0.0
      %v706 = vmax.f32 %v690, 0.0
      %v707 = vmax.f32 %v691, 0.0
      %v708 = vmax.f32 %v692, 0.0
      %v709 = vmax.f32 %v693, 0.0
      %v710 = vmax.f32 %v694, 0.0
      %v711 = vmax.f32 %v695, 0.0
      %v712 = vmax.f32 %v696, 0.0
      %v713 = vmax.f32 %v697, 0.0
      %v714 = vmax.f32 %v698, 0.0
      %v715 = vmax.f32 %v699, 0.0
      %v716 = vmax.f32 %v700, 0.0
      %v717 = vmax.f32 %v701, 0.0
      %v718 = vmax.f32 %v477, %v702
      %v719 = vmax.f32 %v478, %v703
      %v720 = vmax.f32 %v479, %v704
      %v721 = vmax.f32 %v480, %v705
      %v722 = vmax.f32 %v481, %v706
      %v723 = vmax.f32 %v482, %v707
      %v724 = vmax.f32 %v483, %v708
      %v725 = vmax.f32 %v484, %v709
      %v726 = vmax.f32 %v485, %v710
      %v727 = vmax.f32 %v486, %v711
      %v728 = vmax.f32 %v487, %v712
      %v729 = vmax.f32 %v488, %v713
      %v730 = vmax.f32 %v489, %v714
      %v731 = vmax.f32 %v490, %v715
      %v732 = vmax.f32 %v491, %v716
      %v733 = vmax.f32 %v492, %v717
      %734 = vst [vmem:[#allocation2] sm:$0xff] %v718
      %735 = vst [vmem:[#allocation2 + $0x8] sm:$0xff] %v719
      %736 = vst [vmem:[#allocation2 + $0x10] sm:$0xff] %v720
      %737 = vst [vmem:[#allocation2 + $0x18] sm:$0xff] %v721
      %738 = vst [vmem:[#allocation2 + $0x20] sm:$0xff] %v722
      %739 = vst [vmem:[#allocation2 + $0x28] sm:$0xff] %v723
      %740 = vst [vmem:[#allocation2 + $0x30] sm:$0xff] %v724
      %741 = vst [vmem:[#allocation2 + $0x38] sm:$0xff] %v725
      %742 = vst [vmem:[#allocation2 + $0x40] sm:$0xff] %v726
      %743 = vst [vmem:[#allocation2 + $0x48] sm:$0xff] %v727
      %744 = vst [vmem:[#allocation2 + $0x50] sm:$0xff] %v728
      %745 = vst [vmem:[#allocation2 + $0x58] sm:$0xff] %v729
      %746 = vst [vmem:[#allocation2 + $0x60] sm:$0xff] %v730
      %747 = vst [vmem:[#allocation2 + $0x68] sm:$0xff] %v731
      %748 = vst [vmem:[#allocation2 + $0x70] sm:$0xff] %v732
      %749 = vst [vmem:[#allocation2 + $0x78] sm:$0xff] %v733
      %v750 = vld [vmem:[#allocation2] sm:$0xff]
      %v751 = vld [vmem:[#allocation2 + $0x8] sm:$0xff]
      %v752 = vld [vmem:[#allocation2 + $0x10] sm:$0xff]
      %v753 = vld [vmem:[#allocation2 + $0x18] sm:$0xff]
      %v754 = vld [vmem:[#allocation2 + $0x20] sm:$0xff]
      %v755 = vld [vmem:[#allocation2 + $0x28] sm:$0xff]
      %v756 = vld [vmem:[#allocation2 + $0x30] sm:$0xff]
      %v757 = vld [vmem:[#allocation2 + $0x38] sm:$0xff]
      %v758 = vld [vmem:[%s2] sm:$0xff]
      %v759 = vld [vmem:[%s2 + $0x8] sm:$0xff]
      %v760 = vld [vmem:[%s2 + $0x10] sm:$0xff]
      %v761 = vld [vmem:[%s2 + $0x18] sm:$0xff]
      %v762 = vld [vmem:[%s2 + $0x20] sm:$0xff]
      %v763 = vld [vmem:[%s2 + $0x28] sm:$0xff]
      %v764 = vld [vmem:[%s2 + $0x30] sm:$0xff]
      %v765 = vld [vmem:[%s2 + $0x38] sm:$0xff]
      %v766 = vld [vmem:[%s2 + $0x40] sm:$0xff]
      %v767 = vld [vmem:[%s2 + $0x48] sm:$0xff]
      %v768 = vld [vmem:[%s2 + $0x50] sm:$0xff]
      %v769 = vld [vmem:[%s2 + $0x58] sm:$0xff]
      %v770 = vld [vmem:[%s2 + $0x60] sm:$0xff]
      %v771 = vld [vmem:[%s2 + $0x68] sm:$0xff]
      %v772 = vld [vmem:[%s2 + $0x70] sm:$0xff]
      %v773 = vld [vmem:[%s2 + $0x78] sm:$0xff]
      %v774 = vld [vmem:[%s2 + $0x80] sm:$0xff]
      %v775 = vld [vmem:[%s2 + $0x88] sm:$0xff]
      %v776 = vld [vmem:[%s2 + $0x90] sm:$0xff]
      %v777 = vld [vmem:[%s2 + $0x98] sm:$0xff]
      %v778 = vld [vmem:[%s2 + $0xa0] sm:$0xff]
      %v779 = vld [vmem:[%s2 + $0xa8] sm:$0xff]
      %v780 = vld [vmem:[%s2 + $0xb0] sm:$0xff]
      %v781 = vld [vmem:[%s2 + $0xb8] sm:$0xff]
      %v782 = vld [vmem:[%s2 + $0xc0] sm:$0xff]
      %v783 = vld [vmem:[%s2 + $0xc8] sm:$0xff]
      %v784 = vld [vmem:[%s2 + $0xd0] sm:$0xff]
      %v785 = vld [vmem:[%s2 + $0xd8] sm:$0xff]
      %v786 = vld [vmem:[%s2 + $0xe0] sm:$0xff]
      %v787 = vld [vmem:[%s2 + $0xe8] sm:$0xff]
      %v788 = vld [vmem:[%s2 + $0xf0] sm:$0xff]
      %v789 = vld [vmem:[%s2 + $0xf8] sm:$0xff]
      %v790 = vld [vmem:[#allocation2 + $0x40] sm:$0xff]
      %v791 = vld [vmem:[#allocation2 + $0x48] sm:$0xff]
      %s792 = scalar_lea.vmem %s2, 256
      %v793 = vld [vmem:[%s792] sm:$0xff]
      %v794 = vld [vmem:[%s792 + $0x8] sm:$0xff]
      %v795 = vld [vmem:[%s792 + $0x10] sm:$0xff]
      %v796 = vld [vmem:[%s792 + $0x18] sm:$0xff]
      %v797 = vld [vmem:[%s792 + $0x20] sm:$0xff]
      %v798 = vld [vmem:[%s792 + $0x28] sm:$0xff]
      %v799 = vld [vmem:[%s792 + $0x30] sm:$0xff]
      %v800 = vld [vmem:[%s792 + $0x38] sm:$0xff]
      %v801 = vld [vmem:[%s792 + $0x40] sm:$0xff]
      %v802 = vld [vmem:[%s792 + $0x48] sm:$0xff]
      %v803 = vld [vmem:[%s792 + $0x50] sm:$0xff]
      %v804 = vld [vmem:[%s792 + $0x58] sm:$0xff]
      %v805 = vld [vmem:[%s792 + $0x60] sm:$0xff]
      %v806 = vld [vmem:[%s792 + $0x68] sm:$0xff]
      %v807 = vld [vmem:[%s792 + $0x70] sm:$0xff]
      %v808 = vld [vmem:[%s792 + $0x78] sm:$0xff]
      %v809 = vld [vmem:[%s792 + $0x80] sm:$0xff]
      %v810 = vld [vmem:[%s792 + $0x88] sm:$0xff]
      %v811 = vld [vmem:[%s792 + $0x90] sm:$0xff]
      %v812 = vld [vmem:[%s792 + $0x98] sm:$0xff]
      %v813 = vld [vmem:[%s792 + $0xa0] sm:$0xff]
      %v814 = vld [vmem:[%s792 + $0xa8] sm:$0xff]
      %v815 = vld [vmem:[%s792 + $0xb0] sm:$0xff]
      %v816 = vld [vmem:[%s792 + $0xb8] sm:$0xff]
      %v817 = vld [vmem:[%s792 + $0xc0] sm:$0xff]
      %v818 = vld [vmem:[%s792 + $0xc8] sm:$0xff]
      %v819 = vld [vmem:[%s792 + $0xd0] sm:$0xff]
      %v820 = vld [vmem:[%s792 + $0xd8] sm:$0xff]
      %v821 = vld [vmem:[%s792 + $0xe0] sm:$0xff]
      %v822 = vld [vmem:[%s792 + $0xe8] sm:$0xff]
      %v823 = vld [vmem:[%s792 + $0xf0] sm:$0xff]
      %v824 = vld [vmem:[%s792 + $0xf8] sm:$0xff]
      %825 = vmatprep.subr.mxu0 0.0
      %826 = vmatpush1.msra.mxu0 %v793
      %827 = vmatprep.subr.mxu0 0.0
      %828 = vmatpush1.msra.mxu0 %v794
      %829 = vmatprep.subr.mxu0 0.0
      %830 = vmatpush1.msra.mxu0 %v795
      %831 = vmatprep.subr.mxu0 0.0
      %832 = vmatpush1.msra.mxu0 %v796
      %833 = vmatprep.subr.mxu0 0.0
      %834 = vmatpush1.msra.mxu0 %v797
      %835 = vmatprep.subr.mxu0 0.0
      %836 = vmatpush1.msra.mxu0 %v798
      %837 = vmatprep.subr.mxu0 0.0
      %838 = vmatpush1.msra.mxu0 %v799
      %839 = vmatprep.subr.mxu0 0.0
      %840 = vmatpush1.msra.mxu0 %v800
      %841 = vmatprep.subr.mxu0 0.0
      %842 = vmatpush1.msra.mxu0 %v801
      %843 = vmatprep.subr.mxu0 0.0
      %844 = vmatpush1.msra.mxu0 %v802
      %845 = vmatprep.subr.mxu0 0.0
      %846 = vmatpush1.msra.mxu0 %v803
      %847 = vmatprep.subr.mxu0 0.0
      %848 = vmatpush1.msra.mxu0 %v804
      %849 = vmatprep.subr.mxu0 0.0
      %850 = vmatpush1.msra.mxu0 %v805
      %851 = vmatprep.subr.mxu0 0.0
      %852 = vmatpush1.msra.mxu0 %v806
      %853 = vmatprep.subr.mxu0 0.0
      %854 = vmatpush1.msra.mxu0 %v807
      %855 = vmatprep.subr.mxu0 0.0
      %856 = vmatpush1.msra.mxu0 %v808
      %857 = vmatprep.subr.mxu0 0.0
      %858 = vmatpush1.msra.mxu0 %v809
      %859 = vmatprep.subr.mxu0 0.0
      %860 = vmatpush1.msra.mxu0 %v810
      %861 = vmatprep.subr.mxu0 0.0
      %862 = vmatpush1.msra.mxu0 %v811
      %863 = vmatprep.subr.mxu0 0.0
      %864 = vmatpush1.msra.mxu0 %v812
      %865 = vmatprep.subr.mxu0 0.0
      %866 = vmatpush1.msra.mxu0 %v813
      %867 = vmatprep.subr.mxu0 0.0
      %868 = vmatpush1.msra.mxu0 %v814
      %869 = vmatprep.subr.mxu0 0.0
      %870 = vmatpush1.msra.mxu0 %v815
      %871 = vmatprep.subr.mxu0 0.0
      %872 = vmatpush1.msra.mxu0 %v816
      %873 = vmatprep.subr.mxu0 0.0
      %874 = vmatpush1.msra.mxu0 %v817
      %875 = vmatprep.subr.mxu0 0.0
      %876 = vmatpush1.msra.mxu0 %v818
      %877 = vmatprep.subr.mxu0 0.0
      %878 = vmatpush1.msra.mxu0 %v819
      %879 = vmatprep.subr.mxu0 0.0
      %880 = vmatpush1.msra.mxu0 %v820
      %881 = vmatprep.subr.mxu0 0.0
      %882 = vmatpush1.msra.mxu0 %v821
      %883 = vmatprep.subr.mxu0 0.0
      %884 = vmatpush1.msra.mxu0 %v822
      %885 = vmatprep.subr.mxu0 0.0
      %886 = vmatpush1.msra.mxu0 %v823
      %887 = vmatprep.subr.mxu0 0.0
      %888 = vmatpush1.msra.mxu0 %v824
      %889 = vmatprep.mubr.f32.mxu0 %v753
      %890 = vmatmul.mubr.f32.gmra.mrb[0].mxu0 %v752
      %v891 = vpop.f32.mrb[0].mxu0
      %v892 = vadd.f32 0.0, %v891
      %v893 = vpop.f32.mrb[0].mxu0
      %894 = vmatprep.mubr.f32.mxu0 %v755
      %895 = vmatmul.mubr.f32.gmra.mrb[0].mxu0 %v754
      %v896 = vpop.f32.mrb[0].mxu0
      %v897 = vadd.f32 0.0, %v896
      %v898 = vpop.f32.mrb[0].mxu0
      %899 = vmatprep.mubr.f32.mxu0 %v757
      %900 = vmatmul.mubr.f32.gmra.mrb[0].mxu0 %v756
      %v901 = vpop.f32.mrb[0].mxu0
      %v902 = vadd.f32 0.0, %v901
      %v903 = vpop.f32.mrb[0].mxu0
      %904 = vmatprep.mubr.f32.mxu0 %v791
      %905 = vmatmul.mubr.f32.gmra.mrb[0].mxu0 %v790
      %v906 = vpop.f32.mrb[0].mxu0
      %v907 = vadd.f32 0.0, %v906
      %v908 = vpop.f32.mrb[0].mxu0
      %909 = vdwg.mxu0
      %910 = vmatprep.subr.mxu0 0.0
      %911 = vmatpush1.msra.mxu0 %v758
      %912 = vmatprep.subr.mxu0 0.0
      %913 = vmatpush1.msra.mxu0 %v759
      %914 = vmatprep.subr.mxu0 0.0
      %915 = vmatpush1.msra.mxu0 %v760
      %916 = vmatprep.subr.mxu0 0.0
      %917 = vmatpush1.msra.mxu0 %v761
      %918 = vmatprep.subr.mxu0 0.0
      %919 = vmatpush1.msra.mxu0 %v762
      %920 = vmatprep.subr.mxu0 0.0
      %921 = vmatpush1.msra.mxu0 %v763
      %922 = vmatprep.subr.mxu0 0.0
      %923 = vmatpush1.msra.mxu0 %v764
      %924 = vmatprep.subr.mxu0 0.0
      %925 = vmatpush1.msra.mxu0 %v765
      %926 = vmatprep.subr.mxu0 0.0
      %927 = vmatpush1.msra.mxu0 %v766
      %928 = vmatprep.subr.mxu0 0.0
      %929 = vmatpush1.msra.mxu0 %v767
      %930 = vmatprep.subr.mxu0 0.0
      %931 = vmatpush1.msra.mxu0 %v768
      %932 = vmatprep.subr.mxu0 0.0
      %933 = vmatpush1.msra.mxu0 %v769
      %934 = vmatprep.subr.mxu0 0.0
      %935 = vmatpush1.msra.mxu0 %v770
      %936 = vmatprep.subr.mxu0 0.0
      %937 = vmatpush1.msra.mxu0 %v771
      %938 = vmatprep.subr.mxu0 0.0
      %939 = vmatpush1.msra.mxu0 %v772
      %940 = vmatprep.subr.mxu0 0.0
      %941 = vmatpush1.msra.mxu0 %v773
      %942 = vmatprep.subr.mxu0 0.0
      %943 = vmatpush1.msra.mxu0 %v774
      %944 = vmatprep.subr.mxu0 0.0
      %945 = vmatpush1.msra.mxu0 %v775
      %946 = vmatprep.subr.mxu0 0.0
      %947 = vmatpush1.msra.mxu0 %v776
      %948 = vmatprep.subr.mxu0 0.0
      %949 = vmatpush1.msra.mxu0 %v777
      %950 = vmatprep.subr.mxu0 0.0
      %951 = vmatpush1.msra.mxu0 %v778
      %952 = vmatprep.subr.mxu0 0.0
      %953 = vmatpush1.msra.mxu0 %v779
      %954 = vmatprep.subr.mxu0 0.0
      %955 = vmatpush1.msra.mxu0 %v780
      %956 = vmatprep.subr.mxu0 0.0
      %957 = vmatpush1.msra.mxu0 %v781
      %958 = vmatprep.subr.mxu0 0.0
      %959 = vmatpush1.msra.mxu0 %v782
      %960 = vmatprep.subr.mxu0 0.0
      %961 = vmatpush1.msra.mxu0 %v783
      %962 = vmatprep.subr.mxu0 0.0
      %963 = vmatpush1.msra.mxu0 %v784
      %964 = vmatprep.subr.mxu0 0.0
      %965 = vmatpush1.msra.mxu0 %v785
      %966 = vmatprep.subr.mxu0 0.0
      %967 = vmatpush1.msra.mxu0 %v786
      %968 = vmatprep.subr.mxu0 0.0
      %969 = vmatpush1.msra.mxu0 %v787
      %970 = vmatprep.subr.mxu0 0.0
      %971 = vmatpush1.msra.mxu0 %v788
      %972 = vmatprep.subr.mxu0 0.0
      %973 = vmatpush1.msra.mxu0 %v789
      %974 = vmatprep.mubr.f32.mxu0 %v751
      %975 = vmatmul.mubr.f32.gmra.mrb[0].mxu0 %v750
      %v976 = vpop.f32.mrb[0].mxu0
      %v977 = vadd.f32 %v892, %v976
      %v978 = vpop.f32.mrb[0].mxu0
      %979 = vmatprep.mubr.f32.mxu0 %v753
      %980 = vmatmul.mubr.f32.gmra.mrb[0].mxu0 %v752
      %v981 = vpop.f32.mrb[0].mxu0
      %v982 = vadd.f32 %v897, %v981
      %v983 = vpop.f32.mrb[0].mxu0
      %984 = vmatprep.mubr.f32.mxu0 %v755
      %985 = vmatmul.mubr.f32.gmra.mrb[0].mxu0 %v754
      %v986 = vpop.f32.mrb[0].mxu0
      %v987 = vadd.f32 %v902, %v986
      %v988 = vpop.f32.mrb[0].mxu0
      %989 = vmatprep.mubr.f32.mxu0 %v757
      %990 = vmatmul.mubr.f32.gmra.mrb[0].mxu0 %v756
      %v991 = vpop.f32.mrb[0].mxu0
      %v992 = vadd.f32 %v907, %v991
      %v993 = vpop.f32.mrb[0].mxu0
      %994 = vdwg.mxu0
      %v995 = vld [vmem:[#allocation2 + $0x20] sm:$0xff]
      %v996 = vld [vmem:[#allocation2 + $0x28] sm:$0xff]
      %v997 = vld [vmem:[#allocation2 + $0x30] sm:$0xff]
      %v998 = vld [vmem:[#allocation2 + $0x38] sm:$0xff]
      %v999 = vld [vmem:[#allocation2 + $0x40] sm:$0xff]
      %v1000 = vld [vmem:[#allocation2 + $0x48] sm:$0xff]
      %v1001 = vld [vmem:[#allocation2 + $0x50] sm:$0xff]
      %v1002 = vld [vmem:[#allocation2 + $0x58] sm:$0xff]
      %s1003 = scalar_lea.vmem %s2, 512
      %v1004 = vld [vmem:[%s1003] sm:$0xff]
      %v1005 = vld [vmem:[%s1003 + $0x8] sm:$0xff]
      %v1006 = vld [vmem:[%s1003 + $0x10] sm:$0xff]
      %v1007 = vld [vmem:[%s1003 + $0x18] sm:$0xff]
      %v1008 = vld [vmem:[%s1003 + $0x20] sm:$0xff]
      %v1009 = vld [vmem:[%s1003 + $0x28] sm:$0xff]
      %v1010 = vld [vmem:[%s1003 + $0x30] sm:$0xff]
      %v1011 = vld [vmem:[%s1003 + $0x38] sm:$0xff]
      %v1012 = vld [vmem:[%s1003 + $0x40] sm:$0xff]
      %v1013 = vld [vmem:[%s1003 + $0x48] sm:$0xff]
      %v1014 = vld [vmem:[%s1003 + $0x50] sm:$0xff]
      %v1015 = vld [vmem:[%s1003 + $0x58] sm:$0xff]
      %v1016 = vld [vmem:[%s1003 + $0x60] sm:$0xff]
      %v1017 = vld [vmem:[%s1003 + $0x68] sm:$0xff]
      %v1018 = vld [vmem:[%s1003 + $0x70] sm:$0xff]
      %v1019 = vld [vmem:[%s1003 + $0x78] sm:$0xff]
      %v1020 = vld [vmem:[%s1003 + $0x80] sm:$0xff]
      %v1021 = vld [vmem:[%s1003 + $0x88] sm:$0xff]
      %v1022 = vld [vmem:[%s1003 + $0x90] sm:$0xff]
      %v1023 = vld [vmem:[%s1003 + $0x98] sm:$0xff]
      %v1024 = vld [vmem:[%s1003 + $0xa0] sm:$0xff]
      %v1025 = vld [vmem:[%s1003 + $0xa8] sm:$0xff]
      %v1026 = vld [vmem:[%s1003 + $0xb0] sm:$0xff]
      %v1027 = vld [vmem:[%s1003 + $0xb8] sm:$0xff]
      %v1028 = vld [vmem:[%s1003 + $0xc0] sm:$0xff]
      %v1029 = vld [vmem:[%s1003 + $0xc8] sm:$0xff]
      %v1030 = vld [vmem:[%s1003 + $0xd0] sm:$0xff]
      %v1031 = vld [vmem:[%s1003 + $0xd8] sm:$0xff]
      %v1032 = vld [vmem:[%s1003 + $0xe0] sm:$0xff]
      %v1033 = vld [vmem:[%s1003 + $0xe8] sm:$0xff]
      %v1034 = vld [vmem:[%s1003 + $0xf0] sm:$0xff]
      %v1035 = vld [vmem:[%s1003 + $0xf8] sm:$0xff]
      %1036 = vmatprep.subr.mxu0 0.0
      %1037 = vmatpush1.msra.mxu0 %v1004
      %1038 = vmatprep.subr.mxu0 0.0
      %1039 = vmatpush1.msra.mxu0 %v1005
      %1040 = vmatprep.subr.mxu0 0.0
      %1041 = vmatpush1.msra.mxu0 %v1006
      %1042 = vmatprep.subr.mxu0 0.0
      %1043 = vmatpush1.msra.mxu0 %v1007
      %1044 = vmatprep.subr.mxu0 0.0
      %1045 = vmatpush1.msra.mxu0 %v1008
      %1046 = vmatprep.subr.mxu0 0.0
      %1047 = vmatpush1.msra.mxu0 %v1009
      %1048 = vmatprep.subr.mxu0 0.0
      %1049 = vmatpush1.msra.mxu0 %v1010
      %1050 = vmatprep.subr.mxu0 0.0
      %1051 = vmatpush1.msra.mxu0 %v1011
      %1052 = vmatprep.subr.mxu0 0.0
      %1053 = vmatpush1.msra.mxu0 %v1012
      %1054 = vmatprep.subr.mxu0 0.0
      %1055 = vmatpush1.msra.mxu0 %v1013
      %1056 = vmatprep.subr.mxu0 0.0
      %1057 = vmatpush1.msra.mxu0 %v1014
      %1058 = vmatprep.subr.mxu0 0.0
      %1059 = vmatpush1.msra.mxu0 %v1015
      %1060 = vmatprep.subr.mxu0 0.0
      %1061 = vmatpush1.msra.mxu0 %v1016
      %1062 = vmatprep.subr.mxu0 0.0
      %1063 = vmatpush1.msra.mxu0 %v1017
      %1064 = vmatprep.subr.mxu0 0.0
      %1065 = vmatpush1.msra.mxu0 %v1018
      %1066 = vmatprep.subr.mxu0 0.0
      %1067 = vmatpush1.msra.mxu0 %v1019
      %1068 = vmatprep.subr.mxu0 0.0
      %1069 = vmatpush1.msra.mxu0 %v1020
      %1070 = vmatprep.subr.mxu0 0.0
      %1071 = vmatpush1.msra.mxu0 %v1021
      %1072 = vmatprep.subr.mxu0 0.0
      %1073 = vmatpush1.msra.mxu0 %v1022
      %1074 = vmatprep.subr.mxu0 0.0
      %1075 = vmatpush1.msra.mxu0 %v1023
      %1076 = vmatprep.subr.mxu0 0.0
      %1077 = vmatpush1.msra.mxu0 %v1024
      %1078 = vmatprep.subr.mxu0 0.0
      %1079 = vmatpush1.msra.mxu0 %v1025
      %1080 = vmatprep.subr.mxu0 0.0
      %1081 = vmatpush1.msra.mxu0 %v1026
      %1082 = vmatprep.subr.mxu0 0.0
      %1083 = vmatpush1.msra.mxu0 %v1027
      %1084 = vmatprep.subr.mxu0 0.0
      %1085 = vmatpush1.msra.mxu0 %v1028
      %1086 = vmatprep.subr.mxu0 0.0
      %1087 = vmatpush1.msra.mxu0 %v1029
      %1088 = vmatprep.subr.mxu0 0.0
      %1089 = vmatpush1.msra.mxu0 %v1030
      %1090 = vmatprep.subr.mxu0 0.0
      %1091 = vmatpush1.msra.mxu0 %v1031
      %1092 = vmatprep.subr.mxu0 0.0
      %1093 = vmatpush1.msra.mxu0 %v1032
      %1094 = vmatprep.subr.mxu0 0.0
      %1095 = vmatpush1.msra.mxu0 %v1033
      %1096 = vmatprep.subr.mxu0 0.0
      %1097 = vmatpush1.msra.mxu0 %v1034
      %1098 = vmatprep.subr.mxu0 0.0
      %1099 = vmatpush1.msra.mxu0 %v1035
      %1100 = vmatprep.mubr.f32.mxu0 %v996
      %1101 = vmatmul.mubr.f32.gmra.mrb[0].mxu0 %v995
      %v1102 = vpop.f32.mrb[0].mxu0
      %v1103 = vadd.f32 0.0, %v1102
      %v1104 = vpop.f32.mrb[0].mxu0
      %1105 = vmatprep.mubr.f32.mxu0 %v998
      %1106 = vmatmul.mubr.f32.gmra.mrb[0].mxu0 %v997
      %v1107 = vpop.f32.mrb[0].mxu0
      %v1108 = vadd.f32 0.0, %v1107
      %v1109 = vpop.f32.mrb[0].mxu0
      %1110 = vmatprep.mubr.f32.mxu0 %v1000
      %1111 = vmatmul.mubr.f32.gmra.mrb[0].mxu0 %v999
      %v1112 = vpop.f32.mrb[0].mxu0
      %v1113 = vadd.f32 0.0, %v1112
      %v1114 = vpop.f32.mrb[0].mxu0
      %1115 = vmatprep.mubr.f32.mxu0 %v1002
      %1116 = vmatmul.mubr.f32.gmra.mrb[0].mxu0 %v1001
      %v1117 = vpop.f32.mrb[0].mxu0
      %v1118 = vadd.f32 0.0, %v1117
      %v1119 = vpop.f32.mrb[0].mxu0
      %1120 = vdwg.mxu0
      %v1121 = vadd.f32 %v977, %v1103
      %v1122 = vadd.f32 %v982, %v1108
      %v1123 = vadd.f32 %v987, %v1113
      %v1124 = vadd.f32 %v992, %v1118
      %v1125 = vld [vmem:[#allocation2 + $0x30] sm:$0xff]
      %v1126 = vld [vmem:[#allocation2 + $0x38] sm:$0xff]
      %v1127 = vld [vmem:[#allocation2 + $0x40] sm:$0xff]
      %v1128 = vld [vmem:[#allocation2 + $0x48] sm:$0xff]
      %v1129 = vld [vmem:[#allocation2 + $0x50] sm:$0xff]
      %v1130 = vld [vmem:[#allocation2 + $0x58] sm:$0xff]
      %v1131 = vld [vmem:[#allocation2 + $0x60] sm:$0xff]
      %v1132 = vld [vmem:[#allocation2 + $0x68] sm:$0xff]
      %s1133 = scalar_lea.vmem %s2, 768
      %v1134 = vld [vmem:[%s1133] sm:$0xff]
      %v1135 = vld [vmem:[%s1133 + $0x8] sm:$0xff]
      %v1136 = vld [vmem:[%s1133 + $0x10] sm:$0xff]
      %v1137 = vld [vmem:[%s1133 + $0x18] sm:$0xff]
      %v1138 = vld [vmem:[%s1133 + $0x20] sm:$0xff]
      %v1139 = vld [vmem:[%s1133 + $0x28] sm:$0xff]
      %v1140 = vld [vmem:[%s1133 + $0x30] sm:$0xff]
      %v1141 = vld [vmem:[%s1133 + $0x38] sm:$0xff]
      %v1142 = vld [vmem:[%s1133 + $0x40] sm:$0xff]
      %v1143 = vld [vmem:[%s1133 + $0x48] sm:$0xff]
      %v1144 = vld [vmem:[%s1133 + $0x50] sm:$0xff]
      %v1145 = vld [vmem:[%s1133 + $0x58] sm:$0xff]
      %v1146 = vld [vmem:[%s1133 + $0x60] sm:$0xff]
      %v1147 = vld [vmem:[%s1133 + $0x68] sm:$0xff]
      %v1148 = vld [vmem:[%s1133 + $0x70] sm:$0xff]
      %v1149 = vld [vmem:[%s1133 + $0x78] sm:$0xff]
      %v1150 = vld [vmem:[%s1133 + $0x80] sm:$0xff]
      %v1151 = vld [vmem:[%s1133 + $0x88] sm:$0xff]
      %v1152 = vld [vmem:[%s1133 + $0x90] sm:$0xff]
      %v1153 = vld [vmem:[%s1133 + $0x98] sm:$0xff]
      %v1154 = vld [vmem:[%s1133 + $0xa0] sm:$0xff]
      %v1155 = vld [vmem:[%s1133 + $0xa8] sm:$0xff]
      %v1156 = vld [vmem:[%s1133 + $0xb0] sm:$0xff]
      %v1157 = vld [vmem:[%s1133 + $0xb8] sm:$0xff]
      %v1158 = vld [vmem:[%s1133 + $0xc0] sm:$0xff]
      %v1159 = vld [vmem:[%s1133 + $0xc8] sm:$0xff]
      %v1160 = vld [vmem:[%s1133 + $0xd0] sm:$0xff]
      %v1161 = vld [vmem:[%s1133 + $0xd8] sm:$0xff]
      %v1162 = vld [vmem:[%s1133 + $0xe0] sm:$0xff]
      %v1163 = vld [vmem:[%s1133 + $0xe8] sm:$0xff]
      %v1164 = vld [vmem:[%s1133 + $0xf0] sm:$0xff]
      %v1165 = vld [vmem:[%s1133 + $0xf8] sm:$0xff]
      %1166 = vmatprep.subr.mxu0 0.0
      %1167 = vmatpush1.msra.mxu0 %v1134
      %1168 = vmatprep.subr.mxu0 0.0
      %1169 = vmatpush1.msra.mxu0 %v1135
      %1170 = vmatprep.subr.mxu0 0.0
      %1171 = vmatpush1.msra.mxu0 %v1136
      %1172 = vmatprep.subr.mxu0 0.0
      %1173 = vmatpush1.msra.mxu0 %v1137
      %1174 = vmatprep.subr.mxu0 0.0
      %1175 = vmatpush1.msra.mxu0 %v1138
      %1176 = vmatprep.subr.mxu0 0.0
      %1177 = vmatpush1.msra.mxu0 %v1139
      %1178 = vmatprep.subr.mxu0 0.0
      %1179 = vmatpush1.msra.mxu0 %v1140
      %1180 = vmatprep.subr.mxu0 0.0
      %1181 = vmatpush1.msra.mxu0 %v1141
      %1182 = vmatprep.subr.mxu0 0.0
      %1183 = vmatpush1.msra.mxu0 %v1142
      %1184 = vmatprep.subr.mxu0 0.0
      %1185 = vmatpush1.msra.mxu0 %v1143
      %1186 = vmatprep.subr.mxu0 0.0
      %1187 = vmatpush1.msra.mxu0 %v1144
      %1188 = vmatprep.subr.mxu0 0.0
      %1189 = vmatpush1.msra.mxu0 %v1145
      %1190 = vmatprep.subr.mxu0 0.0
      %1191 = vmatpush1.msra.mxu0 %v1146
      %1192 = vmatprep.subr.mxu0 0.0
      %1193 = vmatpush1.msra.mxu0 %v1147
      %1194 = vmatprep.subr.mxu0 0.0
      %1195 = vmatpush1.msra.mxu0 %v1148
      %1196 = vmatprep.subr.mxu0 0.0
      %1197 = vmatpush1.msra.mxu0 %v1149
      %1198 = vmatprep.subr.mxu0 0.0
      %1199 = vmatpush1.msra.mxu0 %v1150
      %1200 = vmatprep.subr.mxu0 0.0
      %1201 = vmatpush1.msra.mxu0 %v1151
      %1202 = vmatprep.subr.mxu0 0.0
      %1203 = vmatpush1.msra.mxu0 %v1152
      %1204 = vmatprep.subr.mxu0 0.0
      %1205 = vmatpush1.msra.mxu0 %v1153
      %1206 = vmatprep.subr.mxu0 0.0
      %1207 = vmatpush1.msra.mxu0 %v1154
      %1208 = vmatprep.subr.mxu0 0.0
      %1209 = vmatpush1.msra.mxu0 %v1155
      %1210 = vmatprep.subr.mxu0 0.0
      %1211 = vmatpush1.msra.mxu0 %v1156
      %1212 = vmatprep.subr.mxu0 0.0
      %1213 = vmatpush1.msra.mxu0 %v1157
      %1214 = vmatprep.subr.mxu0 0.0
      %1215 = vmatpush1.msra.mxu0 %v1158
      %1216 = vmatprep.subr.mxu0 0.0
      %1217 = vmatpush1.msra.mxu0 %v1159
      %1218 = vmatprep.subr.mxu0 0.0
      %1219 = vmatpush1.msra.mxu0 %v1160
      %1220 = vmatprep.subr.mxu0 0.0
      %1221 = vmatpush1.msra.mxu0 %v1161
      %1222 = vmatprep.subr.mxu0 0.0
      %1223 = vmatpush1.msra.mxu0 %v1162
      %1224 = vmatprep.subr.mxu0 0.0
      %1225 = vmatpush1.msra.mxu0 %v1163
      %1226 = vmatprep.subr.mxu0 0.0
      %1227 = vmatpush1.msra.mxu0 %v1164
      %1228 = vmatprep.subr.mxu0 0.0
      %1229 = vmatpush1.msra.mxu0 %v1165
      %1230 = vmatprep.mubr.f32.mxu0 %v1126
      %1231 = vmatmul.mubr.f32.gmra.mrb[0].mxu0 %v1125
      %v1232 = vpop.f32.mrb[0].mxu0
      %v1233 = vadd.f32 0.0, %v1232
      %v1234 = vpop.f32.mrb[0].mxu0
      %1235 = vmatprep.mubr.f32.mxu0 %v1128
      %1236 = vmatmul.mubr.f32.gmra.mrb[0].mxu0 %v1127
      %v1237 = vpop.f32.mrb[0].mxu0
      %v1238 = vadd.f32 0.0, %v1237
      %v1239 = vpop.f32.mrb[0].mxu0
      %1240 = vmatprep.mubr.f32.mxu0 %v1130
      %1241 = vmatmul.mubr.f32.gmra.mrb[0].mxu0 %v1129
      %v1242 = vpop.f32.mrb[0].mxu0
      %v1243 = vadd.f32 0.0, %v1242
      %v1244 = vpop.f32.mrb[0].mxu0
      %1245 = vmatprep.mubr.f32.mxu0 %v1132
      %1246 = vmatmul.mubr.f32.gmra.mrb[0].mxu0 %v1131
      %v1247 = vpop.f32.mrb[0].mxu0
      %v1248 = vadd.f32 0.0, %v1247
      %v1249 = vpop.f32.mrb[0].mxu0
      %1250 = vdwg.mxu0
      %v1251 = vadd.f32 %v1121, %v1233
      %v1252 = vadd.f32 %v1122, %v1238
      %v1253 = vadd.f32 %v1123, %v1243
      %v1254 = vadd.f32 %v1124, %v1248
      %v1255 = vld [vmem:[#allocation2 + $0x40] sm:$0xff]
      %v1256 = vld [vmem:[#allocation2 + $0x48] sm:$0xff]
      %v1257 = vld [vmem:[#allocation2 + $0x50] sm:$0xff]
      %v1258 = vld [vmem:[#allocation2 + $0x58] sm:$0xff]
      %v1259 = vld [vmem:[#allocation2 + $0x60] sm:$0xff]
      %v1260 = vld [vmem:[#allocation2 + $0x68] sm:$0xff]
      %v1261 = vld [vmem:[#allocation2 + $0x70] sm:$0xff]
      %v1262 = vld [vmem:[#allocation2 + $0x78] sm:$0xff]
      %s1263 = scalar_lea.vmem %s2, 1024
      %v1264 = vld [vmem:[%s1263] sm:$0xff]
      %v1265 = vld [vmem:[%s1263 + $0x8] sm:$0xff]
      %v1266 = vld [vmem:[%s1263 + $0x10] sm:$0xff]
      %v1267 = vld [vmem:[%s1263 + $0x18] sm:$0xff]
      %v1268 = vld [vmem:[%s1263 + $0x20] sm:$0xff]
      %v1269 = vld [vmem:[%s1263 + $0x28] sm:$0xff]
      %v1270 = vld [vmem:[%s1263 + $0x30] sm:$0xff]
      %v1271 = vld [vmem:[%s1263 + $0x38] sm:$0xff]
      %v1272 = vld [vmem:[%s1263 + $0x40] sm:$0xff]
      %v1273 = vld [vmem:[%s1263 + $0x48] sm:$0xff]
      %v1274 = vld [vmem:[%s1263 + $0x50] sm:$0xff]
      %v1275 = vld [vmem:[%s1263 + $0x58] sm:$0xff]
      %v1276 = vld [vmem:[%s1263 + $0x60] sm:$0xff]
      %v1277 = vld [vmem:[%s1263 + $0x68] sm:$0xff]
      %v1278 = vld [vmem:[%s1263 + $0x70] sm:$0xff]
      %v1279 = vld [vmem:[%s1263 + $0x78] sm:$0xff]
      %v1280 = vld [vmem:[%s1263 + $0x80] sm:$0xff]
      %v1281 = vld [vmem:[%s1263 + $0x88] sm:$0xff]
      %v1282 = vld [vmem:[%s1263 + $0x90] sm:$0xff]
      %v1283 = vld [vmem:[%s1263 + $0x98] sm:$0xff]
      %v1284 = vld [vmem:[%s1263 + $0xa0] sm:$0xff]
      %v1285 = vld [vmem:[%s1263 + $0xa8] sm:$0xff]
      %v1286 = vld [vmem:[%s1263 + $0xb0] sm:$0xff]
      %v1287 = vld [vmem:[%s1263 + $0xb8] sm:$0xff]
      %v1288 = vld [vmem:[%s1263 + $0xc0] sm:$0xff]
      %v1289 = vld [vmem:[%s1263 + $0xc8] sm:$0xff]
      %v1290 = vld [vmem:[%s1263 + $0xd0] sm:$0xff]
      %v1291 = vld [vmem:[%s1263 + $0xd8] sm:$0xff]
      %v1292 = vld [vmem:[%s1263 + $0xe0] sm:$0xff]
      %v1293 = vld [vmem:[%s1263 + $0xe8] sm:$0xff]
      %v1294 = vld [vmem:[%s1263 + $0xf0] sm:$0xff]
      %v1295 = vld [vmem:[%s1263 + $0xf8] sm:$0xff]
      %1296 = vmatprep.subr.mxu0 0.0
      %1297 = vmatpush1.msra.mxu0 %v1264
      %1298 = vmatprep.subr.mxu0 0.0
      %1299 = vmatpush1.msra.mxu0 %v1265
      %1300 = vmatprep.subr.mxu0 0.0
      %1301 = vmatpush1.msra.mxu0 %v1266
      %1302 = vmatprep.subr.mxu0 0.0
      %1303 = vmatpush1.msra.mxu0 %v1267
      %1304 = vmatprep.subr.mxu0 0.0
      %1305 = vmatpush1.msra.mxu0 %v1268
      %1306 = vmatprep.subr.mxu0 0.0
      %1307 = vmatpush1.msra.mxu0 %v1269
      %1308 = vmatprep.subr.mxu0 0.0
      %1309 = vmatpush1.msra.mxu0 %v1270
      %1310 = vmatprep.subr.mxu0 0.0
      %1311 = vmatpush1.msra.mxu0 %v1271
      %1312 = vmatprep.subr.mxu0 0.0
      %1313 = vmatpush1.msra.mxu0 %v1272
      %1314 = vmatprep.subr.mxu0 0.0
      %1315 = vmatpush1.msra.mxu0 %v1273
      %1316 = vmatprep.subr.mxu0 0.0
      %1317 = vmatpush1.msra.mxu0 %v1274
      %1318 = vmatprep.subr.mxu0 0.0
      %1319 = vmatpush1.msra.mxu0 %v1275
      %1320 = vmatprep.subr.mxu0 0.0
      %1321 = vmatpush1.msra.mxu0 %v1276
      %1322 = vmatprep.subr.mxu0 0.0
      %1323 = vmatpush1.msra.mxu0 %v1277
      %1324 = vmatprep.subr.mxu0 0.0
      %1325 = vmatpush1.msra.mxu0 %v1278
      %1326 = vmatprep.subr.mxu0 0.0
      %1327 = vmatpush1.msra.mxu0 %v1279
      %1328 = vmatprep.subr.mxu0 0.0
      %1329 = vmatpush1.msra.mxu0 %v1280
      %1330 = vmatprep.subr.mxu0 0.0
      %1331 = vmatpush1.msra.mxu0 %v1281
      %1332 = vmatprep.subr.mxu0 0.0
      %1333 = vmatpush1.msra.mxu0 %v1282
      %1334 = vmatprep.subr.mxu0 0.0
      %1335 = vmatpush1.msra.mxu0 %v1283
      %1336 = vmatprep.subr.mxu0 0.0
      %1337 = vmatpush1.msra.mxu0 %v1284
      %1338 = vmatprep.subr.mxu0 0.0
      %1339 = vmatpush1.msra.mxu0 %v1285
      %1340 = vmatprep.subr.mxu0 0.0
      %1341 = vmatpush1.msra.mxu0 %v1286
      %1342 = vmatprep.subr.mxu0 0.0
      %1343 = vmatpush1.msra.mxu0 %v1287
      %1344 = vmatprep.subr.mxu0 0.0
      %1345 = vmatpush1.msra.mxu0 %v1288
      %1346 = vmatprep.subr.mxu0 0.0
      %1347 = vmatpush1.msra.mxu0 %v1289
      %1348 = vmatprep.subr.mxu0 0.0
      %1349 = vmatpush1.msra.mxu0 %v1290
      %1350 = vmatprep.subr.mxu0 0.0
      %1351 = vmatpush1.msra.mxu0 %v1291
      %1352 = vmatprep.subr.mxu0 0.0
      %1353 = vmatpush1.msra.mxu0 %v1292
      %1354 = vmatprep.subr.mxu0 0.0
      %1355 = vmatpush1.msra.mxu0 %v1293
      %1356 = vmatprep.subr.mxu0 0.0
      %1357 = vmatpush1.msra.mxu0 %v1294
      %1358 = vmatprep.subr.mxu0 0.0
      %1359 = vmatpush1.msra.mxu0 %v1295
      %1360 = vmatprep.mubr.f32.mxu0 %v1256
      %1361 = vmatmul.mubr.f32.gmra.mrb[0].mxu0 %v1255
      %v1362 = vpop.f32.mrb[0].mxu0
      %v1363 = vadd.f32 0.0, %v1362
      %v1364 = vpop.f32.mrb[0].mxu0
      %1365 = vmatprep.mubr.f32.mxu0 %v1258
      %1366 = vmatmul.mubr.f32.gmra.mrb[0].mxu0 %v1257
      %v1367 = vpop.f32.mrb[0].mxu0
      %v1368 = vadd.f32 0.0, %v1367
      %v1369 = vpop.f32.mrb[0].mxu0
      %1370 = vmatprep.mubr.f32.mxu0 %v1260
      %1371 = vmatmul.mubr.f32.gmra.mrb[0].mxu0 %v1259
      %v1372 = vpop.f32.mrb[0].mxu0
      %v1373 = vadd.f32 0.0, %v1372
      %v1374 = vpop.f32.mrb[0].mxu0
      %1375 = vmatprep.mubr.f32.mxu0 %v1262
      %1376 = vmatmul.mubr.f32.gmra.mrb[0].mxu0 %v1261
      %v1377 = vpop.f32.mrb[0].mxu0
      %v1378 = vadd.f32 0.0, %v1377
      %v1379 = vpop.f32.mrb[0].mxu0
      %1380 = vdwg.mxu0
      %v1381 = vadd.f32 %v1251, %v1363
      %v1382 = vadd.f32 %v1252, %v1368
      %v1383 = vadd.f32 %v1253, %v1373
      %v1384 = vadd.f32 %v1254, %v1378
      %v1385 = vld [vmem:[%s3] sm:$0x1]
      %v1387 = vlaneseq
      %v1388 = vshrl.u32 %v1387, 7
      %v1389 = vsub.s32 0, %v1388
      %v1390 = vrot.slane %v1385, %v1389
      %v1392 = vadd.f32 %v1381, %v1390
      %v1393 = vadd.f32 %v1382, %v1390
      %v1394 = vadd.f32 %v1383, %v1390
      %v1395 = vadd.f32 %v1384, %v1390
      %v1396 = vmax.f32 %v1392, 0.0
      %v1397 = vmax.f32 %v1393, 0.0
      %v1398 = vmax.f32 %v1394, 0.0
      %v1399 = vmax.f32 %v1395, 0.0
      %1404 = vrot.lane.b32.xlu0 %v1396, 64
      %v1405 = vpop.permute.xlu0 %1404
      %1406 = vrot.lane.b32.xlu0 %v1397, 64
      %v1407 = vpop.permute.xlu0 %1406
      %1408 = vrot.lane.b32.xlu0 %v1398, 64
      %v1409 = vpop.permute.xlu0 %1408
      %1410 = vrot.lane.b32.xlu0 %v1399, 64
      %v1411 = vpop.permute.xlu0 %1410
      %v1416 = vmax.f32 %v1396, %v1405
      %v1417 = vmax.f32 %v1397, %v1407
      %v1418 = vmax.f32 %v1398, %v1409
      %v1419 = vmax.f32 %v1399, %v1411
      %v1420 = vmax.f32 %v1416, %v1417
      %v1421 = vmax.f32 %v1418, %v1419
      %1423 = vrot.lane.b32.xlu0 %v1421, 64
      %v1424 = vpop.permute.xlu0 %1423
      %vm1426 = vcmask 523264
      %v1427 = vsel %vm1426, %v1420, %v1424
      %v1428 = vld [vmem:[%s4] sm:$0xff]
      %v1429 = vld [vmem:[%s4 + $0x8] sm:$0xff]
      %v1430 = vld [vmem:[%s4 + $0x10] sm:$0xff]
      %v1431 = vld [vmem:[%s4 + $0x18] sm:$0xff]
      %v1432 = vld [vmem:[%s4 + $0x20] sm:$0xff]
      %v1433 = vld [vmem:[%s4 + $0x28] sm:$0xff]
      %v1434 = vld [vmem:[%s4 + $0x30] sm:$0xff]
      %v1435 = vld [vmem:[%s4 + $0x38] sm:$0xff]
      %v1436 = vld [vmem:[%s4 + $0x40] sm:$0xff]
      %v1437 = vld [vmem:[%s4 + $0x48] sm:$0xff]
      %v1438 = vld [vmem:[%s4 + $0x50] sm:$0xff]
      %v1439 = vld [vmem:[%s4 + $0x58] sm:$0xff]
      %v1440 = vld [vmem:[%s4 + $0x60] sm:$0xff]
      %v1441 = vld [vmem:[%s4 + $0x68] sm:$0xff]
      %v1442 = vld [vmem:[%s4 + $0x70] sm:$0xff]
      %v1443 = vld [vmem:[%s4 + $0x78] sm:$0xff]
      %v1444 = vld [vmem:[%s5] sm:$0x1]
      %v1446 = vlaneseq
      %v1447 = vshrl.u32 %v1446, 7
      %v1448 = vsub.s32 0, %v1447
      %v1449 = vrot.slane %v1444, %v1448
      %1451 = vmatprep.subr.mxu0 0.0
      %1452 = vmatpush1.msra.mxu0 %v1428
      %1453 = vmatprep.subr.mxu0 0.0
      %1454 = vmatpush1.msra.mxu0 %v1429
      %1455 = vmatprep.subr.mxu0 0.0
      %1456 = vmatpush1.msra.mxu0 %v1430
      %1457 = vmatprep.subr.mxu0 0.0
      %1458 = vmatpush1.msra.mxu0 %v1431
      %1459 = vmatprep.subr.mxu0 0.0
      %1460 = vmatpush1.msra.mxu0 %v1432
      %1461 = vmatprep.subr.mxu0 0.0
      %1462 = vmatpush1.msra.mxu0 %v1433
      %1463 = vmatprep.subr.mxu0 0.0
      %1464 = vmatpush1.msra.mxu0 %v1434
      %1465 = vmatprep.subr.mxu0 0.0
      %1466 = vmatpush1.msra.mxu0 %v1435
      %1467 = vmatprep.subr.mxu0 0.0
      %1468 = vmatpush1.msra.mxu0 %v1436
      %1469 = vmatprep.subr.mxu0 0.0
      %1470 = vmatpush1.msra.mxu0 %v1437
      %1471 = vmatprep.subr.mxu0 0.0
      %1472 = vmatpush1.msra.mxu0 %v1438
      %1473 = vmatprep.subr.mxu0 0.0
      %1474 = vmatpush1.msra.mxu0 %v1439
      %1475 = vmatprep.subr.mxu0 0.0
      %1476 = vmatpush1.msra.mxu0 %v1440
      %1477 = vmatprep.subr.mxu0 0.0
      %1478 = vmatpush1.msra.mxu0 %v1441
      %1479 = vmatprep.subr.mxu0 0.0
      %1480 = vmatpush1.msra.mxu0 %v1442
      %1481 = vmatprep.subr.mxu0 0.0
      %1482 = vmatpush1.msra.mxu0 %v1443
      %1483 = vmatprep.subr.mxu0 0.0
      %1484 = vmatpush1.msra.mxu0 0.0
      %1485 = vmatprep.subr.mxu0 0.0
      %1486 = vmatpush1.msra.mxu0 0.0
      %1487 = vmatprep.subr.mxu0 0.0
      %1488 = vmatpush1.msra.mxu0 0.0
      %1489 = vmatprep.subr.mxu0 0.0
      %1490 = vmatpush1.msra.mxu0 0.0
      %1491 = vmatprep.subr.mxu0 0.0
      %1492 = vmatpush1.msra.mxu0 0.0
      %1493 = vmatprep.subr.mxu0 0.0
      %1494 = vmatpush1.msra.mxu0 0.0
      %1495 = vmatprep.subr.mxu0 0.0
      %1496 = vmatpush1.msra.mxu0 0.0
      %1497 = vmatprep.subr.mxu0 0.0
      %1498 = vmatpush1.msra.mxu0 0.0
      %1499 = vmatprep.subr.mxu0 0.0
      %1500 = vmatpush1.msra.mxu0 0.0
      %1501 = vmatprep.subr.mxu0 0.0
      %1502 = vmatpush1.msra.mxu0 0.0
      %1503 = vmatprep.subr.mxu0 0.0
      %1504 = vmatpush1.msra.mxu0 0.0
      %1505 = vmatprep.subr.mxu0 0.0
      %1506 = vmatpush1.msra.mxu0 0.0
      %1507 = vmatprep.subr.mxu0 0.0
      %1508 = vmatpush1.msra.mxu0 0.0
      %1509 = vmatprep.subr.mxu0 0.0
      %1510 = vmatpush1.msra.mxu0 0.0
      %1511 = vmatprep.subr.mxu0 0.0
      %1512 = vmatpush1.msra.mxu0 0.0
      %1513 = vmatprep.subr.mxu0 0.0
      %1514 = vmatpush1.msra.mxu0 0.0
      %1515 = vmatprep.mubr.f32.mxu0 0.0
      %1516 = vmatmul.mubr.f32.gmra.mrb[0].mxu0 %v1427
      %v1517 = vpop.f32.mrb[0].mxu0
      %v1518 = vadd.f32 %v1449, %v1517
      %v1519 = vpop.f32.mrb[0].mxu0
      %1520 = vdwg.mxu0
      %1521 = vst [vmem:[%s251] sm:$0xff] %v1518
      %p1522 = scmp.lt.s32.totalorder %s17, 1
      %s1523 = scalar_select %p1522, %s17, 1
      %s1524 = smul.addr %s1523, 8
      %s1525 = scalar_lea.vmem %s6, %s1524
      // Predicated region
      $region45: #{cnn_classifier_forward.1} parent=43 // pred_check
        %p1526 = pneg %p166
      $region46: #{cnn_classifier_forward.1} parent=43 // pred_check_branch
        %1528 = sbr.rel (%p1526) target = $region48
      $region47: #{cnn_classifier_forward.1} parent=43 // pred_region
        _
      $region48: #{cnn_classifier_forward.1} parent=43 // pred_fallthru
        _
    $region44: #{cnn_classifier_forward.1} parent=5 // pred_fallthru
      _
    %p1529 = scmp.le.s32.totalorder 2, %s12
    // Predicated region
    $region49: #{cnn_classifier_forward.1} parent=5 // pred_check
      %p1530 = pneg %p1529
    $region50: #{cnn_classifier_forward.1} parent=5 // pred_check_branch
      %1532 = sbr.rel (%p1530) target = $region52
    $region51: #{cnn_classifier_forward.1} parent=5 // pred_region
      %s1533 = ssub.s32 %s12, 2
      // Predicated region
      $region53: #{cnn_classifier_forward.1} parent=51 // pred_check
        %p1534 = pneg %p172
      $region54: #{cnn_classifier_forward.1} parent=51 // pred_check_branch
        %1536 = sbr.rel (%p1534) target = $region56
      $region55: #{cnn_classifier_forward.1} parent=51 // pred_region
        %p1537 = scmp.lt.s32.totalorder %s18, 1
        %s1538 = scalar_select %p1537, %s18, 1
        %s1539 = smul.addr %s1538, 8
        %s1540 = scalar_lea.vmem %s6, %s1539
      $region56: #{cnn_classifier_forward.1} parent=51 // pred_fallthru
        _
    $region52: #{cnn_classifier_forward.1} parent=5 // pred_fallthru
      _
  $region6: #{cnn_classifier_forward.1} parent=0 // loop_footer
    %s16 = sadd.s32 1, %s12
  $region7: #{cnn_classifier_forward.1} parent=0 // loop_footer_branch
    %11 = sbr.rel target = $region3
  $region8: #{cnn_classifier_forward.1} parent=0 // loop_exit
    _

</llo_original>
